<compile_context>
chip_gen: v6e
topology: v6e:2x2x1
jax: 0.10.0
libtpu: 0.0.40
codegen_flags: <defaults>
</compile_context>

<pallas_src>
import functools

import jax
import jax.numpy as jnp
from jax import lax
from jax.experimental import pallas as pl
from jax.experimental.pallas import tpu as pltpu


# ----------------------------------------------------------------------------
# Fused kernel: stem matmul (+bias, Swish) -> head matmul (+bias, Swish)
#               -> avg-pool accumulation -> LayerNorm (no affine) at last tile.
# ----------------------------------------------------------------------------
def _swish(x):
    # x * sigmoid(x) with a single transcendental (exp) + approx EUP reciprocal.
    return x * pl.reciprocal(1.0 + jnp.exp(-x), approx=True)


def _feature_fused_kernel(patches_ref, stem_w_ref, stem_b_ref,
                          head_w_ref, head_b_ref,
                          o_ref, acc_ref, *, hw_total, pad_rows, eps):
    t = pl.program_id(1)

    @pl.when(t == 0)
    def _():
        acc_ref[...] = jnp.zeros_like(acc_ref)

    # --- stem conv (as matmul on im2col patches, BN scale folded into W) -----
    x = patches_ref[0]                                             # (T_HW, Kp) bf16
    y = jnp.dot(x, stem_w_ref[...], preferred_element_type=jnp.float32)
    y = _swish(y + stem_b_ref[...])                                # (T_HW, Cs) f32

    # --- head 1x1 conv (-> 1280, BN scale folded into W) ---------------------
    z = jnp.dot(y.astype(jnp.bfloat16), head_w_ref[...],
                preferred_element_type=jnp.float32)
    z = _swish(z + head_b_ref[...])                                # (T_HW, C) f32

    # global-avg-pool partial sums: keep 8 sublane rows, collapse only at the end
    t_hw, c = z.shape
    acc_ref[...] += jnp.sum(z.reshape(t_hw // 8, 8, c), axis=0)    # (8, C)

    @pl.when(t == pl.num_programs(1) - 1)
    def _():
        pooled = jnp.sum(acc_ref[...], axis=0, keepdims=True)      # (1, C)
        if pad_rows > 0:
            # analytic contribution of the zero-padded patch rows (exact same
            # bf16/f32 path as the main loop: 0 @ W + b -> swish -> head).
            y_pad = _swish(stem_b_ref[...])
            z_pad = jnp.dot(y_pad.astype(jnp.bfloat16), head_w_ref[...],
                            preferred_element_type=jnp.float32)
            z_pad = _swish(z_pad + head_b_ref[...])
            pooled = pooled - float(pad_rows) * z_pad
        pooled = pooled * (1.0 / hw_total)                         # mean over HW
        mu = jnp.mean(pooled, axis=-1, keepdims=True)
        var = jnp.mean((pooled - mu) * (pooled - mu), axis=-1, keepdims=True)
        o_ref[0] = (pooled - mu) * lax.rsqrt(var + eps)            # LN, no gamma/beta


def _round_up(x, m):
    return (x + m - 1) // m * m


def _choose_hw_tile(hw):
    # Single tile for small/medium inputs (per-grid-step overhead dominates);
    # ~1024-row tiles with minimal last-tile padding for large inputs.
    if hw <= 1024:
        return _round_up(hw, 8)
    num_t = -(-hw // 1024)
    return _round_up(-(-hw // num_t), 8)


def feature_fused(patches, stem_w, stem_bias, head_w, head_bias, *, hw, eps=1e-5):
    """patches: (N, HW, Kp) bf16 -> (N, C) f32 (pool + LayerNorm output)."""
    n, hw_in, kp = patches.shape
    assert hw_in == hw
    cs = stem_w.shape[1]
    c = head_w.shape[1]

    t_hw = _choose_hw_tile(hw)
    num_t = pl.cdiv(hw, t_hw)
    hw_padded = num_t * t_hw
    pad_rows = hw_padded - hw
    if pad_rows:
        patches = jnp.pad(patches, ((0, 0), (0, pad_rows), (0, 0)))

    kernel = functools.partial(_feature_fused_kernel,
                               hw_total=hw, pad_rows=pad_rows, eps=eps)

    out = pl.pallas_call(
        kernel,
        out_shape=jax.ShapeDtypeStruct((n, 1, c), jnp.float32),
        grid_spec=pltpu.PrefetchScalarGridSpec(
            num_scalar_prefetch=0,
            grid=(n, num_t),
            in_specs=[
                pl.BlockSpec((1, t_hw, kp), lambda b, t: (b, t, 0)),   # patch tile
                pl.BlockSpec((kp, cs), lambda b, t: (0, 0)),           # stem W (resident)
                pl.BlockSpec((1, cs), lambda b, t: (0, 0)),            # stem bias
                pl.BlockSpec((cs, c), lambda b, t: (0, 0)),            # head W (resident)
                pl.BlockSpec((1, c), lambda b, t: (0, 0)),             # head bias
            ],
            out_specs=pl.BlockSpec((1, 1, c), lambda b, t: (b, 0, 0)),
            scratch_shapes=[pltpu.VMEM((8, c), jnp.float32)],          # pool accumulator
        ),
        compiler_params=pltpu.CompilerParams(
            dimension_semantics=("parallel", "arbitrary")),
    )(patches, stem_w, stem_bias, head_w, head_bias)
    return out.reshape(n, c)


# ----------------------------------------------------------------------------
# JAX glue: TF-"SAME" im2col (bf16), BN folding into weights, parameter init.
# ----------------------------------------------------------------------------
def _same_pad_amounts(size, k, s):
    out = -(-size // s)
    pad_total = max((out - 1) * s + k - size, 0)
    return pad_total // 2, pad_total - pad_total // 2, out


def extract_patches_same(x_nhwc, ksize, stride, kp=None):
    """im2col with TF-SAME padding; optionally zero-pad K (last dim) to `kp`."""
    n, h, w, c = x_nhwc.shape
    ph0, ph1, ho = _same_pad_amounts(h, ksize, stride)
    pw0, pw1, wo = _same_pad_amounts(w, ksize, stride)
    xp = jnp.pad(x_nhwc, ((0, 0), (ph0, ph1), (pw0, pw1), (0, 0)))
    cols = []
    for dy in range(ksize):
        for dx in range(ksize):
            cols.append(
                xp[:, dy:dy + stride * ho:stride, dx:dx + stride * wo:stride, :])
    k = ksize * ksize * c
    if kp is not None and kp > k:
        cols.append(jnp.zeros((n, ho, wo, kp - k), x_nhwc.dtype))
    return jnp.concatenate(cols, axis=-1), ho, wo


def fold_bn(gamma, beta, running_mean, running_var, eps=1e-3):
    # EfficientNet's BatchNorm uses eps=1e-3.
    inv = gamma / jnp.sqrt(running_var + eps)
    return inv, beta - running_mean * inv


def init_params(key, stem_out=32, head_out=1280):
    ks = jax.random.split(key, 8)
    p = {}
    p["stem_w"] = jax.random.normal(ks[0], (3 * 3 * 3, stem_out),
                                    jnp.float32) * (2.0 / 27.0) ** 0.5
    p["stem_bn"] = (1.0 + 0.05 * jax.random.normal(ks[1], (stem_out,)),
                    0.02 * jax.random.normal(ks[2], (stem_out,)),
                    0.01 * jax.random.normal(ks[3], (stem_out,)),
                    jnp.ones((stem_out,)))
    p["head_w"] = jax.random.normal(ks[4], (stem_out, head_out),
                                    jnp.float32) * (2.0 / stem_out) ** 0.5
    p["head_bn"] = (1.0 + 0.05 * jax.random.normal(ks[5], (head_out,)),
                    0.02 * jax.random.normal(ks[6], (head_out,)),
                    0.01 * jax.random.normal(ks[7], (head_out,)),
                    jnp.ones((head_out,)))
    return p


def prepare_feature_inputs(params, x_nchw):
    """NCHW -> bf16 im2col patches (K padded to 32) + BN-scale-folded bf16 weights."""
    # cast to bf16 *before* im2col: halves the prep HBM traffic; values identical
    # to casting after (slicing/padding commutes with the cast).
    x = jnp.transpose(x_nchw, (0, 2, 3, 1)).astype(jnp.bfloat16)     # NCHW -> NHWC
    n = x.shape[0]
    k = 3 * 3 * x.shape[-1]                                          # 27
    kp = _round_up(k, 32)                                            # bf16-friendly K
    patches, ho, wo = extract_patches_same(x, ksize=3, stride=2, kp=kp)
    patches = patches.reshape(n, ho * wo, kp)

    ss, sb = fold_bn(*params["stem_bn"])
    hs, hb = fold_bn(*params["head_bn"])
    # fold BN scales into the weights in f32, then cast to bf16
    stem_w = params["stem_w"] * ss[None, :]
    head_w = params["head_w"] * hs[None, :]
    stem_w = jnp.pad(stem_w, ((0, kp - k), (0, 0))).astype(jnp.bfloat16)
    head_w = head_w.astype(jnp.bfloat16)
    sb = sb.reshape(1, -1).astype(jnp.float32)
    hb = hb.reshape(1, -1).astype(jnp.float32)
    return patches, ho * wo, stem_w, sb, head_w, hb


@jax.jit
def feature_forward(params, x_nchw, eps=1e-5):
    """x_nchw: (N, 3, H, W) float32  ->  (N, 1280) float32 (fused Pallas path)."""
    patches, hw, stem_w, sb, head_w, hb = prepare_feature_inputs(params, x_nchw)
    return feature_fused(patches, stem_w, sb, head_w, hb, hw=hw, eps=eps)


@jax.jit
def feature_forward_ref(params, x_nchw, eps=1e-5):
    """Pure-JAX reference of the same (bf16 matmul, f32 accumulate) forward."""
    patches, hw, stem_w, sb, head_w, hb = prepare_feature_inputs(params, x_nchw)
    n, _, kp = patches.shape
    y = jnp.dot(patches.reshape(n * hw, kp), stem_w,
                preferred_element_type=jnp.float32)
    y = y + sb
    y = y * jax.nn.sigmoid(y)
    z = jnp.dot(y.astype(jnp.bfloat16), head_w, preferred_element_type=jnp.float32)
    z = z + hb
    z = z * jax.nn.sigmoid(z)
    pooled = jnp.mean(z.reshape(n, hw, -1), axis=1)
    mu = jnp.mean(pooled, axis=-1, keepdims=True)
    var = jnp.mean((pooled - mu) ** 2, axis=-1, keepdims=True)
    return (pooled - mu) * lax.rsqrt(var + eps)


if __name__ == "__main__":
    key = jax.random.PRNGKey(0)
    k_param, k_x = jax.random.split(key)
    params = init_params(k_param)

    x = jax.random.normal(k_x, (2, 3, 16, 16), jnp.float32)          # small NCHW input
    out = feature_forward(params, x)
    out = jax.block_until_ready(out)
    ref = feature_forward_ref(params, x)

    assert out.shape == (2, 1280), out.shape
    assert bool(jnp.all(jnp.isfinite(out)))
    # LayerNorm invariant: per-row mean ~ 0
    assert jnp.allclose(jnp.mean(out, axis=-1), 0.0, atol=1e-3)
    # Match the pure-JAX reference of the identical forward pass.
    assert jnp.allclose(out, ref, atol=2e-2, rtol=2e-2), \
        float(jnp.max(jnp.abs(out - ref)))
    print("KERNEL_OK")
</pallas_src>

<mosaic_0001>
module attributes {stable_mosaic.version = 11 : i64} {
  func.func @_feature_fused_kernel(%arg0: i32, %arg1: i32, %arg2: memref<1x64x32xbf16, #tpu.memory_space<vmem>>, %arg3: memref<32x32xbf16, #tpu.memory_space<vmem>>, %arg4: memref<1x32xf32, #tpu.memory_space<vmem>>, %arg5: memref<32x1280xbf16, #tpu.memory_space<vmem>>, %arg6: memref<1x1280xf32, #tpu.memory_space<vmem>>, %arg7: memref<1x1x1280xf32, #tpu.memory_space<vmem>>, %arg8: memref<8x1280xf32, #tpu.memory_space<vmem>>) attributes {dimension_semantics = [#tpu.dimension_semantics<parallel>, #tpu.dimension_semantics<arbitrary>], iteration_bounds = array<i64: 2, 1>, scalar_prefetch = 0 : i64, scratch_operands = 1 : i64, tpu.core_type = #tpu.core_type<tc>, window_params = [{transform_indices = @transform_0, window_bounds = array<i64: 1, 64, 32>}, {pipeline_mode = #tpu.pipeline_mode<synchronous>, transform_indices = @transform_1, window_bounds = array<i64: 32, 32>}, {pipeline_mode = #tpu.pipeline_mode<synchronous>, transform_indices = @transform_2, window_bounds = array<i64: 1, 32>}, {pipeline_mode = #tpu.pipeline_mode<synchronous>, transform_indices = @transform_3, window_bounds = array<i64: 32, 1280>}, {pipeline_mode = #tpu.pipeline_mode<synchronous>, transform_indices = @transform_4, window_bounds = array<i64: 1, 1280>}, {transform_indices = @transform_5, window_bounds = array<i64: 1, 1, 1280>}]} {
    %c0_i32 = arith.constant 0 : i32
    %0 = arith.cmpi eq, %arg1, %c0_i32 : i32
    %1 = arith.extui %0 : i1 to i32
    %c0_i32_0 = arith.constant 0 : i32
    %2 = arith.cmpi ne, %1, %c0_i32_0 : i32
    scf.if %2 {
      %cst_23 = arith.constant 0.000000e+00 : f32
      %38 = vector.broadcast %cst_23 : f32 to vector<8x1280xf32>
      %c0_24 = arith.constant 0 : index
      %c0_25 = arith.constant 0 : index
      %39 = vector.load %arg8[%c0_24, %c0_25] : memref<8x1280xf32, #tpu.memory_space<vmem>>, vector<8x1280xf32>
      tpu.vector_store %arg8[%c0_24, %c0_25], %38 {strides = array<i32>} : memref<8x1280xf32, #tpu.memory_space<vmem>>, vector<8x1280xf32>,
    } else {
    }
    %c0 = arith.constant 0 : index
    %c0_1 = arith.constant 0 : index
    %c0_2 = arith.constant 0 : index
    %3 = vector.load %arg2[%c0, %c0_1, %c0_2] : memref<1x64x32xbf16, #tpu.memory_space<vmem>>, vector<1x64x32xbf16>
    %4 = vector.shape_cast %3 : vector<1x64x32xbf16> to vector<64x32xbf16>
    %c0_3 = arith.constant 0 : index
    %c0_4 = arith.constant 0 : index
    %5 = vector.load %arg3[%c0_3, %c0_4] : memref<32x32xbf16, #tpu.memory_space<vmem>>, vector<32x32xbf16>
    %cst = arith.constant dense<0.000000e+00> : vector<64x32xf32>
    %6 = tpu.matmul %4, %5, %cst {dimension_numbers = #tpu.dot_dimension_numbers<[1], [0], [0], [1], [0, 0, 1, 1], [], []>} : vector<64x32xbf16>, vector<32x32xbf16>, vector<64x32xf32> -> vector<64x32xf32>
    %c0_5 = arith.constant 0 : index
    %c0_6 = arith.constant 0 : index
    %7 = vector.load %arg4[%c0_5, %c0_6] : memref<1x32xf32, #tpu.memory_space<vmem>>, vector<1x32xf32>
    %8 = vector.broadcast %7 : vector<1x32xf32> to vector<64x32xf32>
    %9 = arith.addf %6, %8 : vector<64x32xf32>
    %cst_7 = arith.constant 0.000000e+00 : f32
    %10 = vector.broadcast %cst_7 : f32 to vector<64x32xf32>
    %11 = arith.subf %10, %9 : vector<64x32xf32>
    %12 = math.exp %11 : vector<64x32xf32>
    %cst_8 = arith.constant 1.000000e+00 : f32
    %13 = vector.broadcast %cst_8 : f32 to vector<64x32xf32>
    %14 = arith.addf %13, %12 : vector<64x32xf32>
    %15 = tpu.reciprocal %14 {approx = true} : vector<64x32xf32> -> vector<64x32xf32>
    %16 = arith.mulf %9, %15 : vector<64x32xf32>
    %17 = arith.truncf %16 : vector<64x32xf32> to vector<64x32xbf16>
    %c0_9 = arith.constant 0 : index
    %c0_10 = arith.constant 0 : index
    %18 = vector.load %arg5[%c0_9, %c0_10] : memref<32x1280xbf16, #tpu.memory_space<vmem>>, vector<32x1280xbf16>
    %cst_11 = arith.constant dense<0.000000e+00> : vector<64x1280xf32>
    %19 = tpu.matmul %17, %18, %cst_11 {dimension_numbers = #tpu.dot_dimension_numbers<[1], [0], [0], [1], [0, 0, 1, 1], [], []>} : vector<64x32xbf16>, vector<32x1280xbf16>, vector<64x1280xf32> -> vector<64x1280xf32>
    %c0_12 = arith.constant 0 : index
    %c0_13 = arith.constant 0 : index
    %20 = vector.load %arg6[%c0_12, %c0_13] : memref<1x1280xf32, #tpu.memory_space<vmem>>, vector<1x1280xf32>
    %21 = vector.broadcast %20 : vector<1x1280xf32> to vector<64x1280xf32>
    %22 = arith.addf %19, %21 : vector<64x1280xf32>
    %cst_14 = arith.constant 0.000000e+00 : f32
    %23 = vector.broadcast %cst_14 : f32 to vector<64x1280xf32>
    %24 = arith.subf %23, %22 : vector<64x1280xf32>
    %25 = math.exp %24 : vector<64x1280xf32>
    %cst_15 = arith.constant 1.000000e+00 : f32
    %26 = vector.broadcast %cst_15 : f32 to vector<64x1280xf32>
    %27 = arith.addf %26, %25 : vector<64x1280xf32>
    %28 = tpu.reciprocal %27 {approx = true} : vector<64x1280xf32> -> vector<64x1280xf32>
    %29 = arith.mulf %22, %28 : vector<64x1280xf32>
    %c0_16 = arith.constant 0 : index
    %c0_17 = arith.constant 0 : index
    %30 = vector.load %arg8[%c0_16, %c0_17] : memref<8x1280xf32, #tpu.memory_space<vmem>>, vector<8x1280xf32>
    %31 = vector.shape_cast %29 : vector<64x1280xf32> to vector<8x8x1280xf32>
    %cst_18 = arith.constant dense<0.000000e+00> : vector<8x1280xf32>
    %32 = vector.multi_reduction <add>, %31, %cst_18 [0] : vector<8x8x1280xf32> to vector<8x1280xf32>
    %33 = arith.addf %30, %32 : vector<8x1280xf32>
    %c0_19 = arith.constant 0 : index
    %c0_20 = arith.constant 0 : index
    %34 = vector.load %arg8[%c0_19, %c0_20] : memref<8x1280xf32, #tpu.memory_space<vmem>>, vector<8x1280xf32>
    tpu.vector_store %arg8[%c0_19, %c0_20], %33 {strides = array<i32>} : memref<8x1280xf32, #tpu.memory_space<vmem>>, vector<8x1280xf32>,
    %c0_i32_21 = arith.constant 0 : i32
    %35 = arith.cmpi eq, %arg1, %c0_i32_21 : i32
    %36 = arith.extui %35 : i1 to i32
    %c0_i32_22 = arith.constant 0 : i32
    %37 = arith.cmpi ne, %36, %c0_i32_22 : i32
    scf.if %37 {
      %c0_23 = arith.constant 0 : index
      %c0_24 = arith.constant 0 : index
      %38 = vector.load %arg8[%c0_23, %c0_24] : memref<8x1280xf32, #tpu.memory_space<vmem>>, vector<8x1280xf32>
      %cst_25 = arith.constant dense<0.000000e+00> : vector<1280xf32>
      %39 = vector.multi_reduction <add>, %38, %cst_25 [0] : vector<8x1280xf32> to vector<1280xf32>
      %40 = vector.shape_cast %39 : vector<1280xf32> to vector<1x1280xf32>
      %cst_26 = arith.constant 1.562500e-02 : f32
      %41 = vector.broadcast %cst_26 : f32 to vector<1x1280xf32>
      %42 = arith.mulf %40, %41 : vector<1x1280xf32>
      %cst_27 = arith.constant dense<0.000000e+00> : vector<1xf32>
      %43 = vector.multi_reduction <add>, %42, %cst_27 [1] : vector<1x1280xf32> to vector<1xf32>
      %44 = vector.shape_cast %43 : vector<1xf32> to vector<1x1xf32>
      %cst_28 = arith.constant 1.280000e+03 : f32
      %45 = vector.broadcast %cst_28 : f32 to vector<1x1xf32>
      %46 = arith.divf %44, %45 : vector<1x1xf32>
      %47 = vector.broadcast %46 : vector<1x1xf32> to vector<1x1280xf32>
      %48 = arith.subf %42, %47 : vector<1x1280xf32>
      %49 = vector.broadcast %46 : vector<1x1xf32> to vector<1x1280xf32>
      %50 = arith.subf %42, %49 : vector<1x1280xf32>
      %51 = arith.mulf %48, %50 : vector<1x1280xf32>
      %cst_29 = arith.constant dense<0.000000e+00> : vector<1xf32>
      %52 = vector.multi_reduction <add>, %51, %cst_29 [1] : vector<1x1280xf32> to vector<1xf32>
      %53 = vector.shape_cast %52 : vector<1xf32> to vector<1x1xf32>
      %cst_30 = arith.constant 1.280000e+03 : f32
      %54 = vector.broadcast %cst_30 : f32 to vector<1x1xf32>
      %55 = arith.divf %53, %54 : vector<1x1xf32>
      %56 = vector.broadcast %46 : vector<1x1xf32> to vector<1x1280xf32>
      %57 = arith.subf %42, %56 : vector<1x1280xf32>
      %cst_31 = arith.constant 9.99999974E-6 : f32
      %58 = vector.broadcast %cst_31 : f32 to vector<1x1xf32>
      %59 = arith.addf %55, %58 : vector<1x1xf32>
      %60 = math.rsqrt %59 : vector<1x1xf32>
      %61 = vector.broadcast %60 : vector<1x1xf32> to vector<1x1280xf32>
      %62 = arith.mulf %57, %61 : vector<1x1280xf32>
      %c0_32 = arith.constant 0 : index
      %c0_33 = arith.constant 0 : index
      %c0_34 = arith.constant 0 : index
      %63 = vector.load %arg7[%c0_32, %c0_33, %c0_34] : memref<1x1x1280xf32, #tpu.memory_space<vmem>>, vector<1x1x1280xf32>
      %64 = vector.shape_cast %63 : vector<1x1x1280xf32> to vector<1x1280xf32>
      %65 = vector.shape_cast %62 : vector<1x1280xf32> to vector<1x1x1280xf32>
      tpu.vector_store %arg7[%c0_32, %c0_33, %c0_34], %65 {strides = array<i32>} : memref<1x1x1280xf32, #tpu.memory_space<vmem>>, vector<1x1x1280xf32>,
    } else {
    }
    return
  }
  func.func @transform_0(%arg0: i32, %arg1: i32) -> (i32, i32, i32) {
    %c0_i32 = arith.constant 0 : i32
    %c0_i32_0 = arith.constant 0 : i32
    return %arg0, %arg1, %c0_i32 : i32, i32, i32
  }
  func.func @transform_1(%arg0: i32, %arg1: i32) -> (i32, i32) {
    %c0_i32 = arith.constant 0 : i32
    %c0_i32_0 = arith.constant 0 : i32
    %c0_i32_1 = arith.constant 0 : i32
    return %c0_i32, %c0_i32_0 : i32, i32
  }
  func.func @transform_2(%arg0: i32, %arg1: i32) -> (i32, i32) {
    %c0_i32 = arith.constant 0 : i32
    %c0_i32_0 = arith.constant 0 : i32
    %c0_i32_1 = arith.constant 0 : i32
    return %c0_i32, %c0_i32_0 : i32, i32
  }
  func.func @transform_3(%arg0: i32, %arg1: i32) -> (i32, i32) {
    %c0_i32 = arith.constant 0 : i32
    %c0_i32_0 = arith.constant 0 : i32
    %c0_i32_1 = arith.constant 0 : i32
    return %c0_i32, %c0_i32_0 : i32, i32
  }
  func.func @transform_4(%arg0: i32, %arg1: i32) -> (i32, i32) {
    %c0_i32 = arith.constant 0 : i32
    %c0_i32_0 = arith.constant 0 : i32
    %c0_i32_1 = arith.constant 0 : i32
    return %c0_i32, %c0_i32_0 : i32, i32
  }
  func.func @transform_5(%arg0: i32, %arg1: i32) -> (i32, i32, i32) {
    %c0_i32 = arith.constant 0 : i32
    %c0_i32_0 = arith.constant 0 : i32
    %c0_i32_1 = arith.constant 0 : i32
    return %arg0, %c0_i32, %c0_i32_0 : i32, i32, i32
  }
}

</mosaic_0001>

<llo_original>
// kernel: feature_forward.1
$region0: #{feature_forward.1}
  #allocation0 [shape = 'u32[]', space=smem, size = 0x4, offset = 0x4, fixed_abs, tag = 'smem constant byte address 0x4 - core index']
  #allocation1 [shape = 'u32[144,128]{1,0:T(1,128)}', space=vmem, size = 0x12000, scoped, tag = 'internal scratch']
  #allocation2 [shape = 'f32[8,1280]{1,0:T(8,128)}', space=vmem, size = 0xa000, scoped, tag = 'scratch operand']
  %s0 = inlined_call_operand.vmem [shape: bf16[2,64,32], index: 0, kind: input, shape index: {}]
  %s1 = inlined_call_operand.vmem [shape: bf16[32,32], index: 1, kind: input, shape index: {}]
  %s2 = inlined_call_operand.vmem [shape: f32[1,32], index: 2, kind: input, shape index: {}]
  %s3 = inlined_call_operand.vmem [shape: bf16[32,1280], index: 3, kind: input, shape index: {}]
  %s4 = inlined_call_operand.vmem [shape: f32[1,1280], index: 4, kind: input, shape index: {}]
  %s5 = inlined_call_operand.vmem [shape: f32[2,1,1280], index: 5, kind: output, shape index: {}]
  %s6 = sld [smem:[#allocation0]]
  $region61: #{feature_forward.1} parent=0
    _
  %s8 = ssub.s32 1, %s6
  %s9 = scalar_select 0, %s8, %s6
  loop: start=0, step=1, limit=4
  $region2: #{feature_forward.1} parent=0 // loop_pre_header
    _
  $region3: #{feature_forward.1} parent=0 // loop_header
    %s11 = sphi 0, %s15
    %p12 = scmp.ge.s32.totalorder %s11, 4
    %s18 = sphi 0, %s30
    %s19 = sphi 0, %s26
    %s20 = sphi 0, %s18
    %s21 = sphi 0, %s19
    %s22 = sphi 0, %s20
    %s23 = sphi 0, %s21
    %s35 = sphi 0, %s37
    %s38 = sphi 0, %s35
    %s39 = sphi 0, %s38
    %s55 = sphi 0, %s39
    %s59 = sphi 0, %s59
    %s61 = sphi 0, %s59
    %s62 = sphi 0, %s61
    %s76 = sphi 0, %s62
    %s80 = sphi 0, %s80
    %s82 = sphi 0, %s80
    %s83 = sphi 0, %s82
    %s97 = sphi 0, %s83
    %s101 = sphi 0, %s101
    %s103 = sphi 0, %s101
    %s104 = sphi 0, %s103
    %s118 = sphi 0, %s104
    %s122 = sphi 0, %s122
    %s124 = sphi 0, %s122
    %s125 = sphi 0, %s124
    %s139 = sphi 0, %s125
    %s145 = sphi 0, %s147
    %s148 = sphi 0, %s145
    %s149 = sphi 0, %s148
    %s165 = sphi 0, %s149
  $region4: #{feature_forward.1} parent=0 // loop_header_branch
    %14 = sbr.rel (%p12) target = $region8
  $region5: #{feature_forward.1} parent=0 // loop_body
    %s16 = ssub.s32 %s11, 1
    %s17 = ssub.s32 %s11, 2
    %s24 = sadd.s32 1, %s19
    %p25 = scmp.ge.s32.totalorder %s24, 1
    %s26 = scalar_select %p25, 0, %s24
    %s27 = sadd.s32 1, %s18
    %s28 = scalar_select %p25, %s27, %s18
    %p29 = scmp.ge.s32.totalorder %s28, 2
    %s30 = scalar_select %p29, 0, %s28
    %s31 = ssub.s32 %s18, %s30
    %s32 = ssub.s32 %s19, %s26
    %s33 = sor.u32 %s31, %s32
    %p34 = scmp.eq.s32.totalorder %s33, 0
    %s36 = sadd.s32 %s35, 1
    %s37 = scalar_select %p34, %s35, %s36
    %p40 = pneg %p34
    %p41 = scmp.eq.s32.totalorder %s11, 1
    %p42 = por %p40, %p41
    %p43 = scmp.ne.s32.totalorder %s35, %s38
    %p44 = scmp.eq.s32.totalorder %s11, 0
    %p45 = por %p43, %p44
    %p46 = scmp.ne.s32.totalorder %s35, %s38
    %p47 = scmp.eq.s32.totalorder %s16, 1
    %p48 = por %p46, %p47
    %p49 = scmp.ne.s32.totalorder %s38, %s39
    %p50 = scmp.eq.s32.totalorder %s16, 0
    %p51 = por %p49, %p50
    %p52 = scmp.ne.s32.totalorder %s38, %s39
    %p53 = scmp.eq.s32.totalorder %s17, 1
    %p54 = por %p52, %p53
    %p56 = scmp.ne.s32.totalorder %s39, %s55
    %p57 = scmp.eq.s32.totalorder %s17, 0
    %p58 = por %p56, %p57
    %s60 = sadd.s32 %s59, 1
    %p63 = scmp.eq.s32.totalorder %s11, 1
    %p64 = scmp.ne.s32.totalorder %s59, %s61
    %p65 = scmp.eq.s32.totalorder %s11, 0
    %p66 = por %p64, %p65
    %p67 = scmp.ne.s32.totalorder %s59, %s61
    %p68 = scmp.eq.s32.totalorder %s16, 1
    %p69 = por %p67, %p68
    %p70 = scmp.ne.s32.totalorder %s61, %s62
    %p71 = scmp.eq.s32.totalorder %s16, 0
    %p72 = por %p70, %p71
    %p73 = scmp.ne.s32.totalorder %s61, %s62
    %p74 = scmp.eq.s32.totalorder %s17, 1
    %p75 = por %p73, %p74
    %p77 = scmp.ne.s32.totalorder %s62, %s76
    %p78 = scmp.eq.s32.totalorder %s17, 0
    %p79 = por %p77, %p78
    %s81 = sadd.s32 %s80, 1
    %p84 = scmp.eq.s32.totalorder %s11, 1
    %p85 = scmp.ne.s32.totalorder %s80, %s82
    %p86 = scmp.eq.s32.totalorder %s11, 0
    %p87 = por %p85, %p86
    %p88 = scmp.ne.s32.totalorder %s80, %s82
    %p89 = scmp.eq.s32.totalorder %s16, 1
    %p90 = por %p88, %p89
    %p91 = scmp.ne.s32.totalorder %s82, %s83
    %p92 = scmp.eq.s32.totalorder %s16, 0
    %p93 = por %p91, %p92
    %p94 = scmp.ne.s32.totalorder %s82, %s83
    %p95 = scmp.eq.s32.totalorder %s17, 1
    %p96 = por %p94, %p95
    %p98 = scmp.ne.s32.totalorder %s83, %s97
    %p99 = scmp.eq.s32.totalorder %s17, 0
    %p100 = por %p98, %p99
    %s102 = sadd.s32 %s101, 1
    %p105 = scmp.eq.s32.totalorder %s11, 1
    %p106 = scmp.ne.s32.totalorder %s101, %s103
    %p107 = scmp.eq.s32.totalorder %s11, 0
    %p108 = por %p106, %p107
    %p109 = scmp.ne.s32.totalorder %s101, %s103
    %p110 = scmp.eq.s32.totalorder %s16, 1
    %p111 = por %p109, %p110
    %p112 = scmp.ne.s32.totalorder %s103, %s104
    %p113 = scmp.eq.s32.totalorder %s16, 0
    %p114 = por %p112, %p113
    %p115 = scmp.ne.s32.totalorder %s103, %s104
    %p116 = scmp.eq.s32.totalorder %s17, 1
    %p117 = por %p115, %p116
    %p119 = scmp.ne.s32.totalorder %s104, %s118
    %p120 = scmp.eq.s32.totalorder %s17, 0
    %p121 = por %p119, %p120
    %s123 = sadd.s32 %s122, 1
    %p126 = scmp.eq.s32.totalorder %s11, 1
    %p127 = scmp.ne.s32.totalorder %s122, %s124
    %p128 = scmp.eq.s32.totalorder %s11, 0
    %p129 = por %p127, %p128
    %p130 = scmp.ne.s32.totalorder %s122, %s124
    %p131 = scmp.eq.s32.totalorder %s16, 1
    %p132 = por %p130, %p131
    %p133 = scmp.ne.s32.totalorder %s124, %s125
    %p134 = scmp.eq.s32.totalorder %s16, 0
    %p135 = por %p133, %p134
    %p136 = scmp.ne.s32.totalorder %s124, %s125
    %p137 = scmp.eq.s32.totalorder %s17, 1
    %p138 = por %p136, %p137
    %p140 = scmp.ne.s32.totalorder %s125, %s139
    %p141 = scmp.eq.s32.totalorder %s17, 0
    %p142 = por %p140, %p141
    %s143 = ssub.s32 %s18, %s30
    %p144 = scmp.eq.s32.totalorder %s143, 0
    %s146 = sadd.s32 %s145, 1
    %s147 = scalar_select %p144, %s145, %s146
    %p150 = pneg %p144
    %p151 = scmp.eq.s32.totalorder %s11, 1
    %p152 = por %p150, %p151
    %p153 = scmp.ne.s32.totalorder %s145, %s148
    %p154 = scmp.eq.s32.totalorder %s11, 0
    %p155 = por %p153, %p154
    %p156 = scmp.ne.s32.totalorder %s145, %s148
    %p157 = scmp.eq.s32.totalorder %s16, 1
    %p158 = por %p156, %p157
    %p159 = scmp.ne.s32.totalorder %s148, %s149
    %p160 = scmp.eq.s32.totalorder %s16, 0
    %p161 = por %p159, %p160
    %p162 = scmp.ne.s32.totalorder %s148, %s149
    %p163 = scmp.eq.s32.totalorder %s17, 1
    %p164 = por %p162, %p163
    %p166 = scmp.ne.s32.totalorder %s149, %s165
    %p167 = scmp.eq.s32.totalorder %s17, 0
    %p168 = por %p166, %p167
    %p169 = scmp.le.s32.totalorder 1, %s11
    %p170 = scmp.lt.s32.totalorder %s11, 3
    %p171 = pnand %p169, %p170
    %p172 = pneg %p171
    // Predicated region
    $region9: #{feature_forward.1} parent=5 // pred_check
      _
    $region10: #{feature_forward.1} parent=5 // pred_check_branch
      %174 = sbr.rel (%p171) target = $region12
    $region11: #{feature_forward.1} parent=5 // pred_region
      %s175 = ssub.s32 %s11, 1
      // Predicated region
      $region13: #{feature_forward.1} parent=11 // pred_check
        %p176 = pneg %p72
      $region14: #{feature_forward.1} parent=11 // pred_check_branch
        %178 = sbr.rel (%p176) target = $region16
      $region15: #{feature_forward.1} parent=11 // pred_region
        _
      $region16: #{feature_forward.1} parent=11 // pred_fallthru
        _
      // Predicated region
      $region17: #{feature_forward.1} parent=11 // pred_check
        %p179 = pneg %p93
      $region18: #{feature_forward.1} parent=11 // pred_check_branch
        %181 = sbr.rel (%p179) target = $region20
      $region19: #{feature_forward.1} parent=11 // pred_region
        _
      $region20: #{feature_forward.1} parent=11 // pred_fallthru
        _
      // Predicated region
      $region21: #{feature_forward.1} parent=11 // pred_check
        %p182 = pneg %p114
      $region22: #{feature_forward.1} parent=11 // pred_check_branch
        %184 = sbr.rel (%p182) target = $region24
      $region23: #{feature_forward.1} parent=11 // pred_region
        _
      $region24: #{feature_forward.1} parent=11 // pred_fallthru
        _
      // Predicated region
      $region25: #{feature_forward.1} parent=11 // pred_check
        %p185 = pneg %p135
      $region26: #{feature_forward.1} parent=11 // pred_check_branch
        %187 = sbr.rel (%p185) target = $region28
      $region27: #{feature_forward.1} parent=11 // pred_region
        _
      $region28: #{feature_forward.1} parent=11 // pred_fallthru
        _
    $region12: #{feature_forward.1} parent=5 // pred_fallthru
      _
    %p188 = scmp.lt.s32.totalorder %s11, 2
    // Predicated region
    $region29: #{feature_forward.1} parent=5 // pred_check
      %p189 = pneg %p188
    $region30: #{feature_forward.1} parent=5 // pred_check_branch
      %191 = sbr.rel (%p189) target = $region32
    $region31: #{feature_forward.1} parent=5 // pred_region
      // Predicated region
      $region33: #{feature_forward.1} parent=31 // pred_check
        %p192 = pneg %p45
      $region34: #{feature_forward.1} parent=31 // pred_check_branch
        %194 = sbr.rel (%p192) target = $region36
      $region35: #{feature_forward.1} parent=31 // pred_region
        %s195 = smul.u32 8, %s19
        %p196 = scmp.lt.s32.totalorder %s18, 1
        %s197 = scalar_select %p196, %s18, 1
        %p198 = scmp.lt.s32.totalorder %s195, 7
        %s199 = scalar_select %p198, %s195, 7
        %s200 = smul.addr %s197, 8
        %s201 = sadd.s32 %s199, %s200
        %s202 = smul.addr %s201, 4
        %s203 = scalar_lea.vmem %s0, %s202
        %s204 = smul.u32 8, %s19
      $region36: #{feature_forward.1} parent=31 // pred_fallthru
        _
    $region32: #{feature_forward.1} parent=5 // pred_fallthru
      _
    %p205 = scmp.le.s32.totalorder 1, %s11
    %p206 = scmp.lt.s32.totalorder %s11, 3
    %p207 = pnand %p205, %p206
    %p208 = pneg %p207
    // Predicated region
    $region37: #{feature_forward.1} parent=5 // pred_check
      _
    $region38: #{feature_forward.1} parent=5 // pred_check_branch
      %210 = sbr.rel (%p207) target = $region40
    $region39: #{feature_forward.1} parent=5 // pred_region
      %s211 = ssub.s32 %s11, 1
      %s212 = smul.u32 8, %s21
      %p213 = scmp.lt.s32.totalorder %s20, 1
      %s214 = scalar_select %p213, %s20, 1
      %p215 = scmp.lt.s32.totalorder %s212, 7
      %s216 = scalar_select %p215, %s212, 7
      %s217 = smul.addr %s214, 8
      %s218 = sadd.s32 %s216, %s217
      %s219 = smul.addr %s218, 4
      %s220 = scalar_lea.vmem %s0, %s219
      %p221 = pneg %p51
      %p222 = pneg %p48
      %p223 = pneg %p72
      %p224 = pneg %p69
      %p225 = pneg %p93
      %p226 = pneg %p90
      %p227 = pneg %p114
      %p228 = pneg %p111
      %p229 = pneg %p135
      %p230 = pneg %p132
      %p231 = pneg %p161
      %p232 = pneg %p158
      %p233 = scmp.lt.s32.totalorder %s20, 1
      %s234 = scalar_select %p233, %s20, 1
      %s235 = smul.addr %s234, 10
      %s236 = scalar_lea.vmem %s5, %s235
      %s237 = smul.u32 8, %s21
      %p238 = scmp.lt.s32.totalorder %s20, 1
      %s239 = scalar_select %p238, %s20, 1
      %p240 = scmp.lt.s32.totalorder %s237, 7
      %s241 = scalar_select %p240, %s237, 7
      %s242 = smul.addr %s239, 8
      %s243 = sadd.s32 %s241, %s242
      %s244 = smul.addr %s243, 4
      %s245 = scalar_lea.vmem %s0, %s244
      %s246 = smul.u32 8, %s21
      %p247 = scmp.lt.s32.totalorder %s20, 1
      %s248 = scalar_select %p247, %s20, 1
      %s249 = smul.addr %s248, 10
      %s250 = scalar_lea.vmem %s5, %s249
      %p252 = scmp.eq.s32.totalorder %s21, 0
      // Predicated region
      $region41: #{feature_forward.1} parent=39 // pred_check
        %p253 = pneg %p252
      $region42: #{feature_forward.1} parent=39 // pred_check_branch
        %255 = sbr.rel (%p253) target = $region44
      $region43: #{feature_forward.1} parent=39 // pred_region
        %256 = vst [vmem:[#allocation2] sm:$0xff] 0.0
        %257 = vst [vmem:[#allocation2 + $0x8] sm:$0xff] 0.0
        %258 = vst [vmem:[#allocation2 + $0x10] sm:$0xff] 0.0
        %259 = vst [vmem:[#allocation2 + $0x18] sm:$0xff] 0.0
        %260 = vst [vmem:[#allocation2 + $0x20] sm:$0xff] 0.0
        %261 = vst [vmem:[#allocation2 + $0x28] sm:$0xff] 0.0
        %262 = vst [vmem:[#allocation2 + $0x30] sm:$0xff] 0.0
        %263 = vst [vmem:[#allocation2 + $0x38] sm:$0xff] 0.0
        %264 = vst [vmem:[#allocation2 + $0x40] sm:$0xff] 0.0
        %265 = vst [vmem:[#allocation2 + $0x48] sm:$0xff] 0.0
      $region44: #{feature_forward.1} parent=39 // pred_fallthru
        _
      %v266 = vld [vmem:[%s245] sm:$0xf]
      %v267 = vld [vmem:[%s245 + $0x4] sm:$0xf]
      %v268 = vld [vmem:[%s245 + $0x8] sm:$0xf]
      %v269 = vld [vmem:[%s245 + $0xc] sm:$0xf]
      %v270 = vld [vmem:[%s245 + $0x10] sm:$0xf]
      %v271 = vld [vmem:[%s245 + $0x14] sm:$0xf]
      %v272 = vld [vmem:[%s245 + $0x18] sm:$0xf]
      %v273 = vld [vmem:[%s245 + $0x1c] sm:$0xf]
      %v274 = vld [vmem:[%s1] sm:$0xf]
      %v275 = vld [vmem:[%s1 + $0x4] sm:$0xf]
      %v276 = vld [vmem:[%s1 + $0x8] sm:$0xf]
      %v277 = vld [vmem:[%s1 + $0xc] sm:$0xf]
      %v278 = vld [vmem:[%s2] sm:$0x1]
      %v280 = vlaneseq
      %v281 = vshrl.u32 %v280, 7
      %v282 = vsub.s32 0, %v281
      %v283 = vrot.slane %v278, %v282
      %v293 = vunpack.c.l.b16 %v266
      %v294 = vunpack.c.l.b16 %v267
      %v295 = vunpack.c.l.b16 %v268
      %v296 = vunpack.c.l.b16 %v269
      %v297 = vunpack.c.l.b16 %v270
      %v298 = vunpack.c.l.b16 %v271
      %v299 = vunpack.c.l.b16 %v272
      %v300 = vunpack.c.l.b16 %v273
      %v301 = vpack.c.b16 %v294, %v293
      %v302 = vpack.c.b16 %v296, %v295
      %v303 = vpack.c.b16 %v298, %v297
      %v304 = vpack.c.b16 %v300, %v299
      %v309 = vunpack.c.l.b16 %v274
      %v310 = vunpack.c.l.b16 %v275
      %v311 = vunpack.c.l.b16 %v276
      %v312 = vunpack.c.l.b16 %v277
      %v313 = vpack.c.b16 %v310, %v309
      %v314 = vpack.c.b16 %v312, %v311
      %vm317 = vcmask 261120
      %v319 = vsel %vm317, %v301, 0
      %v322 = vsel %vm317, %v302, 0
      %v325 = vsel %vm317, %v303, 0
      %v328 = vsel %vm317, %v304, 0
      %330 = vmatprep.subr.bf16.mxu0 0
      %331 = vmatpush1.bf16.msra.mxu0 0
      %332 = vmatprep.subr.bf16.mxu0 0
      %333 = vmatpush1.bf16.msra.mxu0 0
      %334 = vmatprep.subr.bf16.mxu0 0
      %335 = vmatpush1.bf16.msra.mxu0 0
      %336 = vmatprep.subr.bf16.mxu0 0
      %337 = vmatpush1.bf16.msra.mxu0 0
      %338 = vmatprep.subr.bf16.mxu0 0
      %339 = vmatpush1.bf16.msra.mxu0 0
      %340 = vmatprep.subr.bf16.mxu0 0
      %341 = vmatpush1.bf16.msra.mxu0 0
      %342 = vmatprep.subr.bf16.mxu0 0
      %343 = vmatpush1.bf16.msra.mxu0 %v314
      %344 = vmatprep.subr.bf16.mxu0 0
      %345 = vmatpush1.bf16.msra.mxu0 %v313
      %346 = vmatprep.subr.bf16.mxu0 0
      %347 = vmatpush2.bf16.msra.mxu0 0
      %348 = vmatprep.subr.bf16.mxu0 0
      %349 = vmatpush2.bf16.msra.mxu0 0
      %350 = vmatprep.subr.bf16.mxu0 0
      %351 = vmatpush2.bf16.msra.mxu0 0
      %352 = vmatprep.subr.bf16.mxu0 0
      %353 = vmatpush2.bf16.msra.mxu0 0
      %354 = vmatprep.subr.bf16.mxu0 0
      %355 = vmatpush2.bf16.msra.mxu0 0
      %356 = vmatprep.subr.bf16.mxu0 0
      %357 = vmatpush2.bf16.msra.mxu0 0
      %358 = vmatprep.subr.bf16.mxu0 0
      %359 = vmatpush2.bf16.msra.mxu0 0
      %360 = vmatprep.subr.bf16.mxu0 0
      %361 = vmatpush2.bf16.msra.mxu0 0
      %362 = vmatprep.mubr.bf16.mxu0 0
      %363 = vmatmul.mubr.bf16.gmra.mxu0 %v319
      %v364 = vpop.f32.mrf.mxu0
      %v365 = vadd.f32 %v283, %v364
      %v366 = vpop.f32.mrf.mxu0
      %v367 = vpop.f32.mrf.mxu0
      %v368 = vadd.f32 %v283, %v367
      %v369 = vpop.f32.mrf.mxu0
      %370 = vmatprep.mubr.bf16.mxu0 0
      %371 = vmatmul.mubr.bf16.gmra.mxu0 %v322
      %v372 = vpop.f32.mrf.mxu0
      %v373 = vadd.f32 %v283, %v372
      %v374 = vpop.f32.mrf.mxu0
      %v375 = vpop.f32.mrf.mxu0
      %v376 = vadd.f32 %v283, %v375
      %v377 = vpop.f32.mrf.mxu0
      %378 = vmatprep.mubr.bf16.mxu0 0
      %379 = vmatmul.mubr.bf16.gmra.mxu0 %v325
      %v380 = vpop.f32.mrf.mxu0
      %v381 = vadd.f32 %v283, %v380
      %v382 = vpop.f32.mrf.mxu0
      %v383 = vpop.f32.mrf.mxu0
      %v384 = vadd.f32 %v283, %v383
      %v385 = vpop.f32.mrf.mxu0
      %386 = vmatprep.mubr.bf16.mxu0 0
      %387 = vmatmul.mubr.bf16.gmra.mxu0 %v328
      %v388 = vpop.f32.mrf.mxu0
      %v389 = vadd.f32 %v283, %v388
      %v390 = vpop.f32.mrf.mxu0
      %v391 = vpop.f32.mrf.mxu0
      %v392 = vadd.f32 %v283, %v391
      %v393 = vpop.f32.mrf.mxu0
      %394 = vdwg.mxu0
      %v395 = vsub.f32 0.0, %v365
      %v396 = vsub.f32 0.0, %v368
      %v397 = vsub.f32 0.0, %v373
      %v398 = vsub.f32 0.0, %v376
      %v399 = vsub.f32 0.0, %v381
      %v400 = vsub.f32 0.0, %v384
      %v401 = vsub.f32 0.0, %v389
      %v402 = vsub.f32 0.0, %v392
      %v403 = vmul.f32 %v395, 1.442695
      %v404 = vpow.pop %v403
      %v405 = vmul.f32 %v396, 1.442695
      %v406 = vpow.pop %v405
      %v407 = vmul.f32 %v397, 1.442695
      %v408 = vpow.pop %v407
      %v409 = vmul.f32 %v398, 1.442695
      %v410 = vpow.pop %v409
      %v411 = vmul.f32 %v399, 1.442695
      %v412 = vpow.pop %v411
      %v413 = vmul.f32 %v400, 1.442695
      %v414 = vpow.pop %v413
      %v415 = vmul.f32 %v401, 1.442695
      %v416 = vpow.pop %v415
      %v417 = vmul.f32 %v402, 1.442695
      %v418 = vpow.pop %v417
      %v419 = vadd.f32 %v404, 1.0
      %v420 = vadd.f32 %v406, 1.0
      %v421 = vadd.f32 %v408, 1.0
      %v422 = vadd.f32 %v410, 1.0
      %v423 = vadd.f32 %v412, 1.0
      %v424 = vadd.f32 %v414, 1.0
      %v425 = vadd.f32 %v416, 1.0
      %v426 = vadd.f32 %v418, 1.0
      %v427 = vrcp.pop %v419
      %v428 = vrcp.pop %v420
      %v429 = vrcp.pop %v421
      %v430 = vrcp.pop %v422
      %v431 = vrcp.pop %v423
      %v432 = vrcp.pop %v424
      %v433 = vrcp.pop %v425
      %v434 = vrcp.pop %v426
      %v435 = vmul.f32 %v365, %v427
      %v436 = vmul.f32 %v368, %v428
      %v437 = vmul.f32 %v373, %v429
      %v438 = vmul.f32 %v376, %v430
      %v439 = vmul.f32 %v381, %v431
      %v440 = vmul.f32 %v384, %v432
      %v441 = vmul.f32 %v389, %v433
      %v442 = vmul.f32 %v392, %v434
      %v443 = vpack.c.bf16 %v436, %v435
      %v444 = vpack.c.bf16 %v438, %v437
      %v445 = vpack.c.bf16 %v440, %v439
      %v446 = vpack.c.bf16 %v442, %v441
      %v447 = vld [vmem:[%s3] sm:$0xff]
      %v448 = vld [vmem:[%s3 + $0x8] sm:$0xff]
      %v449 = vld [vmem:[%s3 + $0x10] sm:$0xff]
      %v450 = vld [vmem:[%s3 + $0x18] sm:$0xff]
      %v451 = vld [vmem:[%s3 + $0x20] sm:$0xff]
      %v452 = vld [vmem:[%s3 + $0x28] sm:$0xff]
      %v453 = vld [vmem:[%s3 + $0x30] sm:$0xff]
      %v454 = vld [vmem:[%s3 + $0x38] sm:$0xff]
      %v455 = vld [vmem:[%s3 + $0x40] sm:$0xff]
      %v456 = vld [vmem:[%s3 + $0x48] sm:$0xff]
      %v457 = vld [vmem:[%s3 + $0x50] sm:$0xff]
      %v458 = vld [vmem:[%s3 + $0x58] sm:$0xff]
      %v459 = vld [vmem:[%s3 + $0x60] sm:$0xff]
      %v460 = vld [vmem:[%s3 + $0x68] sm:$0xff]
      %v461 = vld [vmem:[%s3 + $0x70] sm:$0xff]
      %v462 = vld [vmem:[%s3 + $0x78] sm:$0xff]
      %v463 = vld [vmem:[%s3 + $0x80] sm:$0xff]
      %v464 = vld [vmem:[%s3 + $0x88] sm:$0xff]
      %v465 = vld [vmem:[%s3 + $0x90] sm:$0xff]
      %v466 = vld [vmem:[%s3 + $0x98] sm:$0xff]
      %v467 = vld [vmem:[%s4] sm:$0xff]
      %v468 = vld [vmem:[%s4 + $0x8] sm:$0x3]
      %v471 = vlaneseq
      %v472 = vshrl.u32 %v471, 7
      %v473 = vsub.s32 0, %v472
      %v474 = vrot.slane %v467, %v473
      %v475 = vlaneseq
      %v476 = vshrl.u32 %v475, 7
      %v477 = vsub.s32 1, %v476
      %v478 = vrot.slane %v467, %v477
      %v479 = vlaneseq
      %v480 = vshrl.u32 %v479, 7
      %v481 = vsub.s32 2, %v480
      %v482 = vrot.slane %v467, %v481
      %v483 = vlaneseq
      %v484 = vshrl.u32 %v483, 7
      %v485 = vsub.s32 3, %v484
      %v486 = vrot.slane %v467, %v485
      %v487 = vlaneseq
      %v488 = vshrl.u32 %v487, 7
      %v489 = vsub.s32 4, %v488
      %v490 = vrot.slane %v467, %v489
      %v491 = vlaneseq
      %v492 = vshrl.u32 %v491, 7
      %v493 = vsub.s32 5, %v492
      %v494 = vrot.slane %v467, %v493
      %v495 = vlaneseq
      %v496 = vshrl.u32 %v495, 7
      %v497 = vsub.s32 6, %v496
      %v498 = vrot.slane %v467, %v497
      %v499 = vlaneseq
      %v500 = vshrl.u32 %v499, 7
      %v501 = vsub.s32 7, %v500
      %v502 = vrot.slane %v467, %v501
      %v503 = vlaneseq
      %v504 = vshrl.u32 %v503, 7
      %v505 = vsub.s32 0, %v504
      %v506 = vrot.slane %v468, %v505
      %v507 = vlaneseq
      %v508 = vshrl.u32 %v507, 7
      %v509 = vsub.s32 1, %v508
      %v510 = vrot.slane %v468, %v509
      %v541 = vunpack.c.l.b16 %v447
      %v542 = vunpack.c.h.b16 %v447
      %v543 = vunpack.c.l.b16 %v448
      %v544 = vunpack.c.h.b16 %v448
      %v545 = vunpack.c.l.b16 %v449
      %v546 = vunpack.c.h.b16 %v449
      %v547 = vunpack.c.l.b16 %v450
      %v548 = vunpack.c.h.b16 %v450
      %v549 = vunpack.c.l.b16 %v451
      %v550 = vunpack.c.h.b16 %v451
      %v551 = vunpack.c.l.b16 %v452
      %v552 = vunpack.c.h.b16 %v452
      %v553 = vunpack.c.l.b16 %v453
      %v554 = vunpack.c.h.b16 %v453
      %v555 = vunpack.c.l.b16 %v454
      %v556 = vunpack.c.h.b16 %v454
      %v557 = vunpack.c.l.b16 %v455
      %v558 = vunpack.c.h.b16 %v455
      %v559 = vunpack.c.l.b16 %v456
      %v560 = vunpack.c.h.b16 %v456
      %v561 = vunpack.c.l.b16 %v457
      %v562 = vunpack.c.h.b16 %v457
      %v563 = vunpack.c.l.b16 %v458
      %v564 = vunpack.c.h.b16 %v458
      %v565 = vunpack.c.l.b16 %v459
      %v566 = vunpack.c.h.b16 %v459
      %v567 = vunpack.c.l.b16 %v460
      %v568 = vunpack.c.h.b16 %v460
      %v569 = vunpack.c.l.b16 %v461
      %v570 = vunpack.c.h.b16 %v461
      %v571 = vunpack.c.l.b16 %v462
      %v572 = vunpack.c.h.b16 %v462
      %v573 = vunpack.c.l.b16 %v463
      %v574 = vunpack.c.h.b16 %v463
      %v575 = vunpack.c.l.b16 %v464
      %v576 = vunpack.c.h.b16 %v464
      %v577 = vunpack.c.l.b16 %v465
      %v578 = vunpack.c.h.b16 %v465
      %v579 = vunpack.c.l.b16 %v466
      %v580 = vunpack.c.h.b16 %v466
      %v581 = vpack.c.b16 %v551, %v541
      %v582 = vpack.c.b16 %v552, %v542
      %v583 = vpack.c.b16 %v553, %v543
      %v584 = vpack.c.b16 %v554, %v544
      %v585 = vpack.c.b16 %v555, %v545
      %v586 = vpack.c.b16 %v556, %v546
      %v587 = vpack.c.b16 %v557, %v547
      %v588 = vpack.c.b16 %v558, %v548
      %v589 = vpack.c.b16 %v559, %v549
      %v590 = vpack.c.b16 %v560, %v550
      %v591 = vpack.c.b16 %v571, %v561
      %v592 = vpack.c.b16 %v572, %v562
      %v593 = vpack.c.b16 %v573, %v563
      %v594 = vpack.c.b16 %v574, %v564
      %v595 = vpack.c.b16 %v575, %v565
      %v596 = vpack.c.b16 %v576, %v566
      %v597 = vpack.c.b16 %v577, %v567
      %v598 = vpack.c.b16 %v578, %v568
      %v599 = vpack.c.b16 %v579, %v569
      %v600 = vpack.c.b16 %v580, %v570
      %v622 = vsel %vm317, %v443, 0
      %v625 = vsel %vm317, %v444, 0
      %v628 = vsel %vm317, %v445, 0
      %v631 = vsel %vm317, %v446, 0
      %633 = vmatprep.subr.bf16.mxu0 0
      %634 = vmatpush1.bf16.msra.mxu0 0
      %635 = vmatprep.subr.bf16.mxu0 0
      %636 = vmatpush1.bf16.msra.mxu0 0
      %637 = vmatprep.subr.bf16.mxu0 0
      %638 = vmatpush1.bf16.msra.mxu0 0
      %639 = vmatprep.subr.bf16.mxu0 0
      %640 = vmatpush1.bf16.msra.mxu0 0
      %641 = vmatprep.subr.bf16.mxu0 0
      %642 = vmatpush1.bf16.msra.mxu0 0
      %643 = vmatprep.subr.bf16.mxu0 0
      %644 = vmatpush1.bf16.msra.mxu0 0
      %645 = vmatprep.subr.bf16.mxu0 %v592
      %646 = vmatpush1.bf16.msra.mxu0 %v591
      %647 = vmatprep.subr.bf16.mxu0 %v582
      %648 = vmatpush1.bf16.msra.mxu0 %v581
      %649 = vmatprep.subr.bf16.mxu0 0
      %650 = vmatpush2.bf16.msra.mxu0 0
      %651 = vmatprep.subr.bf16.mxu0 0
      %652 = vmatpush2.bf16.msra.mxu0 0
      %653 = vmatprep.subr.bf16.mxu0 0
      %654 = vmatpush2.bf16.msra.mxu0 0
      %655 = vmatprep.subr.bf16.mxu0 0
      %656 = vmatpush2.bf16.msra.mxu0 0
      %657 = vmatprep.subr.bf16.mxu0 0
      %658 = vmatpush2.bf16.msra.mxu0 0
      %659 = vmatprep.subr.bf16.mxu0 0
      %660 = vmatpush2.bf16.msra.mxu0 0
      %661 = vmatprep.subr.bf16.mxu0 0
      %662 = vmatpush2.bf16.msra.mxu0 0
      %663 = vmatprep.subr.bf16.mxu0 0
      %664 = vmatpush2.bf16.msra.mxu0 0
      %665 = vmatprep.mubr.bf16.mxu0 0
      %666 = vmatmul.mubr.bf16.gmra.mxu0 %v622
      %v667 = vpop.f32.mrf.mxu0
      %v668 = vadd.f32 %v474, %v667
      %v669 = vpop.f32.mrf.mxu0
      %v670 = vadd.f32 %v478, %v669
      %v671 = vpop.f32.mrf.mxu0
      %v672 = vadd.f32 %v474, %v671
      %v673 = vpop.f32.mrf.mxu0
      %v674 = vadd.f32 %v478, %v673
      %675 = vmatprep.mubr.bf16.mxu0 0
      %676 = vmatmul.mubr.bf16.gmra.mxu0 %v625
      %v677 = vpop.f32.mrf.mxu0
      %v678 = vadd.f32 %v474, %v677
      %v679 = vpop.f32.mrf.mxu0
      %v680 = vadd.f32 %v478, %v679
      %v681 = vpop.f32.mrf.mxu0
      %v682 = vadd.f32 %v474, %v681
      %v683 = vpop.f32.mrf.mxu0
      %v684 = vadd.f32 %v478, %v683
      %685 = vmatprep.mubr.bf16.mxu0 0
      %686 = vmatmul.mubr.bf16.gmra.mxu0 %v628
      %v687 = vpop.f32.mrf.mxu0
      %v688 = vadd.f32 %v474, %v687
      %v689 = vpop.f32.mrf.mxu0
      %v690 = vadd.f32 %v478, %v689
      %v691 = vpop.f32.mrf.mxu0
      %v692 = vadd.f32 %v474, %v691
      %v693 = vpop.f32.mrf.mxu0
      %v694 = vadd.f32 %v478, %v693
      %695 = vmatprep.mubr.bf16.mxu0 0
      %696 = vmatmul.mubr.bf16.gmra.mxu0 %v631
      %v697 = vpop.f32.mrf.mxu0
      %v698 = vadd.f32 %v474, %v697
      %v699 = vpop.f32.mrf.mxu0
      %v700 = vadd.f32 %v478, %v699
      %v701 = vpop.f32.mrf.mxu0
      %v702 = vadd.f32 %v474, %v701
      %v703 = vpop.f32.mrf.mxu0
      %v704 = vadd.f32 %v478, %v703
      %705 = vdwg.mxu0
      %706 = vmatprep.subr.bf16.mxu0 0
      %707 = vmatpush1.bf16.msra.mxu0 0
      %708 = vmatprep.subr.bf16.mxu0 0
      %709 = vmatpush1.bf16.msra.mxu0 0
      %710 = vmatprep.subr.bf16.mxu0 0
      %711 = vmatpush1.bf16.msra.mxu0 0
      %712 = vmatprep.subr.bf16.mxu0 0
      %713 = vmatpush1.bf16.msra.mxu0 0
      %714 = vmatprep.subr.bf16.mxu0 0
      %715 = vmatpush1.bf16.msra.mxu0 0
      %716 = vmatprep.subr.bf16.mxu0 0
      %717 = vmatpush1.bf16.msra.mxu0 0
      %718 = vmatprep.subr.bf16.mxu0 %v594
      %719 = vmatpush1.bf16.msra.mxu0 %v593
      %720 = vmatprep.subr.bf16.mxu0 %v584
      %721 = vmatpush1.bf16.msra.mxu0 %v583
      %722 = vmatprep.subr.bf16.mxu0 0
      %723 = vmatpush2.bf16.msra.mxu0 0
      %724 = vmatprep.subr.bf16.mxu0 0
      %725 = vmatpush2.bf16.msra.mxu0 0
      %726 = vmatprep.subr.bf16.mxu0 0
      %727 = vmatpush2.bf16.msra.mxu0 0
      %728 = vmatprep.subr.bf16.mxu0 0
      %729 = vmatpush2.bf16.msra.mxu0 0
      %730 = vmatprep.subr.bf16.mxu0 0
      %731 = vmatpush2.bf16.msra.mxu0 0
      %732 = vmatprep.subr.bf16.mxu0 0
      %733 = vmatpush2.bf16.msra.mxu0 0
      %734 = vmatprep.subr.bf16.mxu0 0
      %735 = vmatpush2.bf16.msra.mxu0 0
      %736 = vmatprep.subr.bf16.mxu0 0
      %737 = vmatpush2.bf16.msra.mxu0 0
      %738 = vmatprep.mubr.bf16.mxu0 0
      %739 = vmatmul.mubr.bf16.gmra.mxu0 %v622
      %v740 = vpop.f32.mrf.mxu0
      %v741 = vadd.f32 %v482, %v740
      %v742 = vpop.f32.mrf.mxu0
      %v743 = vadd.f32 %v486, %v742
      %v744 = vpop.f32.mrf.mxu0
      %v745 = vadd.f32 %v482, %v744
      %v746 = vpop.f32.mrf.mxu0
      %v747 = vadd.f32 %v486, %v746
      %748 = vmatprep.mubr.bf16.mxu0 0
      %749 = vmatmul.mubr.bf16.gmra.mxu0 %v625
      %v750 = vpop.f32.mrf.mxu0
      %v751 = vadd.f32 %v482, %v750
      %v752 = vpop.f32.mrf.mxu0
      %v753 = vadd.f32 %v486, %v752
      %v754 = vpop.f32.mrf.mxu0
      %v755 = vadd.f32 %v482, %v754
      %v756 = vpop.f32.mrf.mxu0
      %v757 = vadd.f32 %v486, %v756
      %758 = vmatprep.mubr.bf16.mxu0 0
      %759 = vmatmul.mubr.bf16.gmra.mxu0 %v628
      %v760 = vpop.f32.mrf.mxu0
      %v761 = vadd.f32 %v482, %v760
      %v762 = vpop.f32.mrf.mxu0
      %v763 = vadd.f32 %v486, %v762
      %v764 = vpop.f32.mrf.mxu0
      %v765 = vadd.f32 %v482, %v764
      %v766 = vpop.f32.mrf.mxu0
      %v767 = vadd.f32 %v486, %v766
      %768 = vmatprep.mubr.bf16.mxu0 0
      %769 = vmatmul.mubr.bf16.gmra.mxu0 %v631
      %v770 = vpop.f32.mrf.mxu0
      %v771 = vadd.f32 %v482, %v770
      %v772 = vpop.f32.mrf.mxu0
      %v773 = vadd.f32 %v486, %v772
      %v774 = vpop.f32.mrf.mxu0
      %v775 = vadd.f32 %v482, %v774
      %v776 = vpop.f32.mrf.mxu0
      %v777 = vadd.f32 %v486, %v776
      %778 = vdwg.mxu0
      %779 = vmatprep.subr.bf16.mxu0 0
      %780 = vmatpush1.bf16.msra.mxu0 0
      %781 = vmatprep.subr.bf16.mxu0 0
      %782 = vmatpush1.bf16.msra.mxu0 0
      %783 = vmatprep.subr.bf16.mxu0 0
      %784 = vmatpush1.bf16.msra.mxu0 0
      %785 = vmatprep.subr.bf16.mxu0 0
      %786 = vmatpush1.bf16.msra.mxu0 0
      %787 = vmatprep.subr.bf16.mxu0 0
      %788 = vmatpush1.bf16.msra.mxu0 0
      %789 = vmatprep.subr.bf16.mxu0 0
      %790 = vmatpush1.bf16.msra.mxu0 0
      %791 = vmatprep.subr.bf16.mxu0 %v596
      %792 = vmatpush1.bf16.msra.mxu0 %v595
      %793 = vmatprep.subr.bf16.mxu0 %v586
      %794 = vmatpush1.bf16.msra.mxu0 %v585
      %795 = vmatprep.subr.bf16.mxu0 0
      %796 = vmatpush2.bf16.msra.mxu0 0
      %797 = vmatprep.subr.bf16.mxu0 0
      %798 = vmatpush2.bf16.msra.mxu0 0
      %799 = vmatprep.subr.bf16.mxu0 0
      %800 = vmatpush2.bf16.msra.mxu0 0
      %801 = vmatprep.subr.bf16.mxu0 0
      %802 = vmatpush2.bf16.msra.mxu0 0
      %803 = vmatprep.subr.bf16.mxu0 0
      %804 = vmatpush2.bf16.msra.mxu0 0
      %805 = vmatprep.subr.bf16.mxu0 0
      %806 = vmatpush2.bf16.msra.mxu0 0
      %807 = vmatprep.subr.bf16.mxu0 0
      %808 = vmatpush2.bf16.msra.mxu0 0
      %809 = vmatprep.subr.bf16.mxu0 0
      %810 = vmatpush2.bf16.msra.mxu0 0
      %811 = vmatprep.mubr.bf16.mxu0 0
      %812 = vmatmul.mubr.bf16.gmra.mxu0 %v622
      %v813 = vpop.f32.mrf.mxu0
      %v814 = vadd.f32 %v490, %v813
      %v815 = vpop.f32.mrf.mxu0
      %v816 = vadd.f32 %v494, %v815
      %v817 = vpop.f32.mrf.mxu0
      %v818 = vadd.f32 %v490, %v817
      %v819 = vpop.f32.mrf.mxu0
      %v820 = vadd.f32 %v494, %v819
      %821 = vmatprep.mubr.bf16.mxu0 0
      %822 = vmatmul.mubr.bf16.gmra.mxu0 %v625
      %v823 = vpop.f32.mrf.mxu0
      %v824 = vadd.f32 %v490, %v823
      %v825 = vpop.f32.mrf.mxu0
      %v826 = vadd.f32 %v494, %v825
      %v827 = vpop.f32.mrf.mxu0
      %v828 = vadd.f32 %v490, %v827
      %v829 = vpop.f32.mrf.mxu0
      %v830 = vadd.f32 %v494, %v829
      %831 = vmatprep.mubr.bf16.mxu0 0
      %832 = vmatmul.mubr.bf16.gmra.mxu0 %v628
      %v833 = vpop.f32.mrf.mxu0
      %v834 = vadd.f32 %v490, %v833
      %v835 = vpop.f32.mrf.mxu0
      %v836 = vadd.f32 %v494, %v835
      %v837 = vpop.f32.mrf.mxu0
      %v838 = vadd.f32 %v490, %v837
      %v839 = vpop.f32.mrf.mxu0
      %v840 = vadd.f32 %v494, %v839
      %841 = vmatprep.mubr.bf16.mxu0 0
      %842 = vmatmul.mubr.bf16.gmra.mxu0 %v631
      %v843 = vpop.f32.mrf.mxu0
      %v844 = vadd.f32 %v490, %v843
      %v845 = vpop.f32.mrf.mxu0
      %v846 = vadd.f32 %v494, %v845
      %v847 = vpop.f32.mrf.mxu0
      %v848 = vadd.f32 %v490, %v847
      %v849 = vpop.f32.mrf.mxu0
      %v850 = vadd.f32 %v494, %v849
      %851 = vdwg.mxu0
      %852 = vmatprep.subr.bf16.mxu0 0
      %853 = vmatpush1.bf16.msra.mxu0 0
      %854 = vmatprep.subr.bf16.mxu0 0
      %855 = vmatpush1.bf16.msra.mxu0 0
      %856 = vmatprep.subr.bf16.mxu0 0
      %857 = vmatpush1.bf16.msra.mxu0 0
      %858 = vmatprep.subr.bf16.mxu0 0
      %859 = vmatpush1.bf16.msra.mxu0 0
      %860 = vmatprep.subr.bf16.mxu0 0
      %861 = vmatpush1.bf16.msra.mxu0 0
      %862 = vmatprep.subr.bf16.mxu0 0
      %863 = vmatpush1.bf16.msra.mxu0 0
      %864 = vmatprep.subr.bf16.mxu0 %v598
      %865 = vmatpush1.bf16.msra.mxu0 %v597
      %866 = vmatprep.subr.bf16.mxu0 %v588
      %867 = vmatpush1.bf16.msra.mxu0 %v587
      %868 = vmatprep.subr.bf16.mxu0 0
      %869 = vmatpush2.bf16.msra.mxu0 0
      %870 = vmatprep.subr.bf16.mxu0 0
      %871 = vmatpush2.bf16.msra.mxu0 0
      %872 = vmatprep.subr.bf16.mxu0 0
      %873 = vmatpush2.bf16.msra.mxu0 0
      %874 = vmatprep.subr.bf16.mxu0 0
      %875 = vmatpush2.bf16.msra.mxu0 0
      %876 = vmatprep.subr.bf16.mxu0 0
      %877 = vmatpush2.bf16.msra.mxu0 0
      %878 = vmatprep.subr.bf16.mxu0 0
      %879 = vmatpush2.bf16.msra.mxu0 0
      %880 = vmatprep.subr.bf16.mxu0 0
      %881 = vmatpush2.bf16.msra.mxu0 0
      %882 = vmatprep.subr.bf16.mxu0 0
      %883 = vmatpush2.bf16.msra.mxu0 0
      %884 = vmatprep.mubr.bf16.mxu0 0
      %885 = vmatmul.mubr.bf16.gmra.mxu0 %v622
      %v886 = vpop.f32.mrf.mxu0
      %v887 = vadd.f32 %v498, %v886
      %v888 = vpop.f32.mrf.mxu0
      %v889 = vadd.f32 %v502, %v888
      %v890 = vpop.f32.mrf.mxu0
      %v891 = vadd.f32 %v498, %v890
      %v892 = vpop.f32.mrf.mxu0
      %v893 = vadd.f32 %v502, %v892
      %894 = vmatprep.mubr.bf16.mxu0 0
      %895 = vmatmul.mubr.bf16.gmra.mxu0 %v625
      %v896 = vpop.f32.mrf.mxu0
      %v897 = vadd.f32 %v498, %v896
      %v898 = vpop.f32.mrf.mxu0
      %v899 = vadd.f32 %v502, %v898
      %v900 = vpop.f32.mrf.mxu0
      %v901 = vadd.f32 %v498, %v900
      %v902 = vpop.f32.mrf.mxu0
      %v903 = vadd.f32 %v502, %v902
      %904 = vmatprep.mubr.bf16.mxu0 0
      %905 = vmatmul.mubr.bf16.gmra.mxu0 %v628
      %v906 = vpop.f32.mrf.mxu0
      %v907 = vadd.f32 %v498, %v906
      %v908 = vpop.f32.mrf.mxu0
      %v909 = vadd.f32 %v502, %v908
      %v910 = vpop.f32.mrf.mxu0
      %v911 = vadd.f32 %v498, %v910
      %v912 = vpop.f32.mrf.mxu0
      %v913 = vadd.f32 %v502, %v912
      %914 = vmatprep.mubr.bf16.mxu0 0
      %915 = vmatmul.mubr.bf16.gmra.mxu0 %v631
      %v916 = vpop.f32.mrf.mxu0
      %v917 = vadd.f32 %v498, %v916
      %v918 = vpop.f32.mrf.mxu0
      %v919 = vadd.f32 %v502, %v918
      %v920 = vpop.f32.mrf.mxu0
      %v921 = vadd.f32 %v498, %v920
      %v922 = vpop.f32.mrf.mxu0
      %v923 = vadd.f32 %v502, %v922
      %924 = vdwg.mxu0
      %925 = vmatprep.subr.bf16.mxu0 0
      %926 = vmatpush1.bf16.msra.mxu0 0
      %927 = vmatprep.subr.bf16.mxu0 0
      %928 = vmatpush1.bf16.msra.mxu0 0
      %929 = vmatprep.subr.bf16.mxu0 0
      %930 = vmatpush1.bf16.msra.mxu0 0
      %931 = vmatprep.subr.bf16.mxu0 0
      %932 = vmatpush1.bf16.msra.mxu0 0
      %933 = vmatprep.subr.bf16.mxu0 0
      %934 = vmatpush1.bf16.msra.mxu0 0
      %935 = vmatprep.subr.bf16.mxu0 0
      %936 = vmatpush1.bf16.msra.mxu0 0
      %937 = vmatprep.subr.bf16.mxu0 %v600
      %938 = vmatpush1.bf16.msra.mxu0 %v599
      %939 = vmatprep.subr.bf16.mxu0 %v590
      %940 = vmatpush1.bf16.msra.mxu0 %v589
      %941 = vmatprep.subr.bf16.mxu0 0
      %942 = vmatpush2.bf16.msra.mxu0 0
      %943 = vmatprep.subr.bf16.mxu0 0
      %944 = vmatpush2.bf16.msra.mxu0 0
      %945 = vmatprep.subr.bf16.mxu0 0
      %946 = vmatpush2.bf16.msra.mxu0 0
      %947 = vmatprep.subr.bf16.mxu0 0
      %948 = vmatpush2.bf16.msra.mxu0 0
      %949 = vmatprep.subr.bf16.mxu0 0
      %950 = vmatpush2.bf16.msra.mxu0 0
      %951 = vmatprep.subr.bf16.mxu0 0
      %952 = vmatpush2.bf16.msra.mxu0 0
      %953 = vmatprep.subr.bf16.mxu0 0
      %954 = vmatpush2.bf16.msra.mxu0 0
      %955 = vmatprep.subr.bf16.mxu0 0
      %956 = vmatpush2.bf16.msra.mxu0 0
      %957 = vmatprep.mubr.bf16.mxu0 0
      %958 = vmatmul.mubr.bf16.gmra.mxu0 %v622
      %v959 = vpop.f32.mrf.mxu0
      %v960 = vadd.f32 %v506, %v959
      %v961 = vpop.f32.mrf.mxu0
      %v962 = vadd.f32 %v510, %v961
      %v963 = vpop.f32.mrf.mxu0
      %v964 = vadd.f32 %v506, %v963
      %v965 = vpop.f32.mrf.mxu0
      %v966 = vadd.f32 %v510, %v965
      %967 = vmatprep.mubr.bf16.mxu0 0
      %968 = vmatmul.mubr.bf16.gmra.mxu0 %v625
      %v969 = vpop.f32.mrf.mxu0
      %v970 = vadd.f32 %v506, %v969
      %v971 = vpop.f32.mrf.mxu0
      %v972 = vadd.f32 %v510, %v971
      %v973 = vpop.f32.mrf.mxu0
      %v974 = vadd.f32 %v506, %v973
      %v975 = vpop.f32.mrf.mxu0
      %v976 = vadd.f32 %v510, %v975
      %977 = vmatprep.mubr.bf16.mxu0 0
      %978 = vmatmul.mubr.bf16.gmra.mxu0 %v628
      %v979 = vpop.f32.mrf.mxu0
      %v980 = vadd.f32 %v506, %v979
      %v981 = vpop.f32.mrf.mxu0
      %v982 = vadd.f32 %v510, %v981
      %v983 = vpop.f32.mrf.mxu0
      %v984 = vadd.f32 %v506, %v983
      %v985 = vpop.f32.mrf.mxu0
      %v986 = vadd.f32 %v510, %v985
      %987 = vmatprep.mubr.bf16.mxu0 0
      %988 = vmatmul.mubr.bf16.gmra.mxu0 %v631
      %v989 = vpop.f32.mrf.mxu0
      %v990 = vadd.f32 %v506, %v989
      %v991 = vpop.f32.mrf.mxu0
      %v992 = vadd.f32 %v510, %v991
      %v993 = vpop.f32.mrf.mxu0
      %v994 = vadd.f32 %v506, %v993
      %v995 = vpop.f32.mrf.mxu0
      %v996 = vadd.f32 %v510, %v995
      %997 = vdwg.mxu0
      %v998 = vsub.f32 0.0, %v668
      %v999 = vsub.f32 0.0, %v670
      %v1000 = vsub.f32 0.0, %v741
      %v1001 = vsub.f32 0.0, %v743
      %v1002 = vsub.f32 0.0, %v814
      %v1003 = vsub.f32 0.0, %v816
      %v1004 = vsub.f32 0.0, %v887
      %v1005 = vsub.f32 0.0, %v889
      %v1006 = vsub.f32 0.0, %v960
      %v1007 = vsub.f32 0.0, %v962
      %v1008 = vsub.f32 0.0, %v672
      %v1009 = vsub.f32 0.0, %v674
      %v1010 = vsub.f32 0.0, %v745
      %v1011 = vsub.f32 0.0, %v747
      %v1012 = vsub.f32 0.0, %v818
      %v1013 = vsub.f32 0.0, %v820
      %v1014 = vsub.f32 0.0, %v891
      %v1015 = vsub.f32 0.0, %v893
      %v1016 = vsub.f32 0.0, %v964
      %v1017 = vsub.f32 0.0, %v966
      %v1018 = vsub.f32 0.0, %v678
      %v1019 = vsub.f32 0.0, %v680
      %v1020 = vsub.f32 0.0, %v751
      %v1021 = vsub.f32 0.0, %v753
      %v1022 = vsub.f32 0.0, %v824
      %v1023 = vsub.f32 0.0, %v826
      %v1024 = vsub.f32 0.0, %v897
      %v1025 = vsub.f32 0.0, %v899
      %v1026 = vsub.f32 0.0, %v970
      %v1027 = vsub.f32 0.0, %v972
      %v1028 = vsub.f32 0.0, %v682
      %v1029 = vsub.f32 0.0, %v684
      %v1030 = vsub.f32 0.0, %v755
      %v1031 = vsub.f32 0.0, %v757
      %v1032 = vsub.f32 0.0, %v828
      %v1033 = vsub.f32 0.0, %v830
      %v1034 = vsub.f32 0.0, %v901
      %v1035 = vsub.f32 0.0, %v903
      %v1036 = vsub.f32 0.0, %v974
      %v1037 = vsub.f32 0.0, %v976
      %v1038 = vsub.f32 0.0, %v688
      %v1039 = vsub.f32 0.0, %v690
      %v1040 = vsub.f32 0.0, %v761
      %v1041 = vsub.f32 0.0, %v763
      %v1042 = vsub.f32 0.0, %v834
      %v1043 = vsub.f32 0.0, %v836
      %v1044 = vsub.f32 0.0, %v907
      %v1045 = vsub.f32 0.0, %v909
      %v1046 = vsub.f32 0.0, %v980
      %v1047 = vsub.f32 0.0, %v982
      %v1048 = vsub.f32 0.0, %v692
      %v1049 = vsub.f32 0.0, %v694
      %v1050 = vsub.f32 0.0, %v765
      %v1051 = vsub.f32 0.0, %v767
      %v1052 = vsub.f32 0.0, %v838
      %v1053 = vsub.f32 0.0, %v840
      %v1054 = vsub.f32 0.0, %v911
      %v1055 = vsub.f32 0.0, %v913
      %v1056 = vsub.f32 0.0, %v984
      %v1057 = vsub.f32 0.0, %v986
      %v1058 = vsub.f32 0.0, %v698
      %v1059 = vsub.f32 0.0, %v700
      %v1060 = vsub.f32 0.0, %v771
      %v1061 = vsub.f32 0.0, %v773
      %v1062 = vsub.f32 0.0, %v844
      %v1063 = vsub.f32 0.0, %v846
      %v1064 = vsub.f32 0.0, %v917
      %v1065 = vsub.f32 0.0, %v919
      %v1066 = vsub.f32 0.0, %v990
      %v1067 = vsub.f32 0.0, %v992
      %v1068 = vsub.f32 0.0, %v702
      %v1069 = vsub.f32 0.0, %v704
      %v1070 = vsub.f32 0.0, %v775
      %v1071 = vsub.f32 0.0, %v777
      %v1072 = vsub.f32 0.0, %v848
      %v1073 = vsub.f32 0.0, %v850
      %v1074 = vsub.f32 0.0, %v921
      %v1075 = vsub.f32 0.0, %v923
      %v1076 = vsub.f32 0.0, %v994
      %v1077 = vsub.f32 0.0, %v996
      %v1078 = vmul.f32 %v998, 1.442695
      %v1079 = vpow.pop %v1078
      %v1080 = vmul.f32 %v999, 1.442695
      %v1081 = vpow.pop %v1080
      %v1082 = vmul.f32 %v1000, 1.442695
      %v1083 = vpow.pop %v1082
      %v1084 = vmul.f32 %v1001, 1.442695
      %v1085 = vpow.pop %v1084
      %v1086 = vmul.f32 %v1002, 1.442695
      %v1087 = vpow.pop %v1086
      %v1088 = vmul.f32 %v1003, 1.442695
      %v1089 = vpow.pop %v1088
      %v1090 = vmul.f32 %v1004, 1.442695
      %v1091 = vpow.pop %v1090
      %v1092 = vmul.f32 %v1005, 1.442695
      %v1093 = vpow.pop %v1092
      %v1094 = vmul.f32 %v1006, 1.442695
      %v1095 = vpow.pop %v1094
      %v1096 = vmul.f32 %v1007, 1.442695
      %v1097 = vpow.pop %v1096
      %v1098 = vmul.f32 %v1008, 1.442695
      %v1099 = vpow.pop %v1098
      %v1100 = vmul.f32 %v1009, 1.442695
      %v1101 = vpow.pop %v1100
      %v1102 = vmul.f32 %v1010, 1.442695
      %v1103 = vpow.pop %v1102
      %v1104 = vmul.f32 %v1011, 1.442695
      %v1105 = vpow.pop %v1104
      %v1106 = vmul.f32 %v1012, 1.442695
      %v1107 = vpow.pop %v1106
      %v1108 = vmul.f32 %v1013, 1.442695
      %v1109 = vpow.pop %v1108
      %v1110 = vmul.f32 %v1014, 1.442695
      %v1111 = vpow.pop %v1110
      %v1112 = vmul.f32 %v1015, 1.442695
      %v1113 = vpow.pop %v1112
      %v1114 = vmul.f32 %v1016, 1.442695
      %v1115 = vpow.pop %v1114
      %v1116 = vmul.f32 %v1017, 1.442695
      %v1117 = vpow.pop %v1116
      %v1118 = vmul.f32 %v1018, 1.442695
      %v1119 = vpow.pop %v1118
      %v1120 = vmul.f32 %v1019, 1.442695
      %v1121 = vpow.pop %v1120
      %v1122 = vmul.f32 %v1020, 1.442695
      %v1123 = vpow.pop %v1122
      %v1124 = vmul.f32 %v1021, 1.442695
      %v1125 = vpow.pop %v1124
      %v1126 = vmul.f32 %v1022, 1.442695
      %v1127 = vpow.pop %v1126
      %v1128 = vmul.f32 %v1023, 1.442695
      %v1129 = vpow.pop %v1128
      %v1130 = vmul.f32 %v1024, 1.442695
      %v1131 = vpow.pop %v1130
      %v1132 = vmul.f32 %v1025, 1.442695
      %v1133 = vpow.pop %v1132
      %v1134 = vmul.f32 %v1026, 1.442695
      %v1135 = vpow.pop %v1134
      %v1136 = vmul.f32 %v1027, 1.442695
      %v1137 = vpow.pop %v1136
      %v1138 = vmul.f32 %v1028, 1.442695
      %v1139 = vpow.pop %v1138
      %v1140 = vmul.f32 %v1029, 1.442695
      %v1141 = vpow.pop %v1140
      %v1142 = vmul.f32 %v1030, 1.442695
      %v1143 = vpow.pop %v1142
      %v1144 = vmul.f32 %v1031, 1.442695
      %v1145 = vpow.pop %v1144
      %v1146 = vmul.f32 %v1032, 1.442695
      %v1147 = vpow.pop %v1146
      %v1148 = vmul.f32 %v1033, 1.442695
      %v1149 = vpow.pop %v1148
      %v1150 = vmul.f32 %v1034, 1.442695
      %v1151 = vpow.pop %v1150
      %v1152 = vmul.f32 %v1035, 1.442695
      %v1153 = vpow.pop %v1152
      %v1154 = vmul.f32 %v1036, 1.442695
      %v1155 = vpow.pop %v1154
      %v1156 = vmul.f32 %v1037, 1.442695
      %v1157 = vpow.pop %v1156
      %v1158 = vmul.f32 %v1038, 1.442695
      %v1159 = vpow.pop %v1158
      %v1160 = vmul.f32 %v1039, 1.442695
      %v1161 = vpow.pop %v1160
      %v1162 = vmul.f32 %v1040, 1.442695
      %v1163 = vpow.pop %v1162
      %v1164 = vmul.f32 %v1041, 1.442695
      %v1165 = vpow.pop %v1164
      %v1166 = vmul.f32 %v1042, 1.442695
      %v1167 = vpow.pop %v1166
      %v1168 = vmul.f32 %v1043, 1.442695
      %v1169 = vpow.pop %v1168
      %v1170 = vmul.f32 %v1044, 1.442695
      %v1171 = vpow.pop %v1170
      %v1172 = vmul.f32 %v1045, 1.442695
      %v1173 = vpow.pop %v1172
      %v1174 = vmul.f32 %v1046, 1.442695
      %v1175 = vpow.pop %v1174
      %v1176 = vmul.f32 %v1047, 1.442695
      %v1177 = vpow.pop %v1176
      %v1178 = vmul.f32 %v1048, 1.442695
      %v1179 = vpow.pop %v1178
      %v1180 = vmul.f32 %v1049, 1.442695
      %v1181 = vpow.pop %v1180
      %v1182 = vmul.f32 %v1050, 1.442695
      %v1183 = vpow.pop %v1182
      %v1184 = vmul.f32 %v1051, 1.442695
      %v1185 = vpow.pop %v1184
      %v1186 = vmul.f32 %v1052, 1.442695
      %v1187 = vpow.pop %v1186
      %v1188 = vmul.f32 %v1053, 1.442695
      %v1189 = vpow.pop %v1188
      %v1190 = vmul.f32 %v1054, 1.442695
      %v1191 = vpow.pop %v1190
      %v1192 = vmul.f32 %v1055, 1.442695
      %v1193 = vpow.pop %v1192
      %v1194 = vmul.f32 %v1056, 1.442695
      %v1195 = vpow.pop %v1194
      %v1196 = vmul.f32 %v1057, 1.442695
      %v1197 = vpow.pop %v1196
      %v1198 = vmul.f32 %v1058, 1.442695
      %v1199 = vpow.pop %v1198
      %v1200 = vmul.f32 %v1059, 1.442695
      %v1201 = vpow.pop %v1200
      %v1202 = vmul.f32 %v1060, 1.442695
      %v1203 = vpow.pop %v1202
      %v1204 = vmul.f32 %v1061, 1.442695
      %v1205 = vpow.pop %v1204
      %v1206 = vmul.f32 %v1062, 1.442695
      %v1207 = vpow.pop %v1206
      %v1208 = vmul.f32 %v1063, 1.442695
      %v1209 = vpow.pop %v1208
      %v1210 = vmul.f32 %v1064, 1.442695
      %v1211 = vpow.pop %v1210
      %v1212 = vmul.f32 %v1065, 1.442695
      %v1213 = vpow.pop %v1212
      %v1214 = vmul.f32 %v1066, 1.442695
      %v1215 = vpow.pop %v1214
      %v1216 = vmul.f32 %v1067, 1.442695
      %v1217 = vpow.pop %v1216
      %v1218 = vmul.f32 %v1068, 1.442695
      %v1219 = vpow.pop %v1218
      %v1220 = vmul.f32 %v1069, 1.442695
      %v1221 = vpow.pop %v1220
      %v1222 = vmul.f32 %v1070, 1.442695
      %v1223 = vpow.pop %v1222
      %v1224 = vmul.f32 %v1071, 1.442695
      %v1225 = vpow.pop %v1224
      %v1226 = vmul.f32 %v1072, 1.442695
      %v1227 = vpow.pop %v1226
      %v1228 = vmul.f32 %v1073, 1.442695
      %v1229 = vpow.pop %v1228
      %v1230 = vmul.f32 %v1074, 1.442695
      %v1231 = vpow.pop %v1230
      %v1232 = vmul.f32 %v1075, 1.442695
      %v1233 = vpow.pop %v1232
      %v1234 = vmul.f32 %v1076, 1.442695
      %v1235 = vpow.pop %v1234
      %v1236 = vmul.f32 %v1077, 1.442695
      %v1237 = vpow.pop %v1236
      %v1238 = vadd.f32 %v1079, 1.0
      %v1239 = vadd.f32 %v1081, 1.0
      %v1240 = vadd.f32 %v1083, 1.0
      %v1241 = vadd.f32 %v1085, 1.0
      %v1242 = vadd.f32 %v1087, 1.0
      %v1243 = vadd.f32 %v1089, 1.0
      %v1244 = vadd.f32 %v1091, 1.0
      %v1245 = vadd.f32 %v1093, 1.0
      %v1246 = vadd.f32 %v1095, 1.0
      %v1247 = vadd.f32 %v1097, 1.0
      %v1248 = vadd.f32 %v1099, 1.0
      %v1249 = vadd.f32 %v1101, 1.0
      %v1250 = vadd.f32 %v1103, 1.0
      %v1251 = vadd.f32 %v1105, 1.0
      %v1252 = vadd.f32 %v1107, 1.0
      %v1253 = vadd.f32 %v1109, 1.0
      %v1254 = vadd.f32 %v1111, 1.0
      %v1255 = vadd.f32 %v1113, 1.0
      %v1256 = vadd.f32 %v1115, 1.0
      %v1257 = vadd.f32 %v1117, 1.0
      %v1258 = vadd.f32 %v1119, 1.0
      %v1259 = vadd.f32 %v1121, 1.0
      %v1260 = vadd.f32 %v1123, 1.0
      %v1261 = vadd.f32 %v1125, 1.0
      %v1262 = vadd.f32 %v1127, 1.0
      %v1263 = vadd.f32 %v1129, 1.0
      %v1264 = vadd.f32 %v1131, 1.0
      %v1265 = vadd.f32 %v1133, 1.0
      %v1266 = vadd.f32 %v1135, 1.0
      %v1267 = vadd.f32 %v1137, 1.0
      %v1268 = vadd.f32 %v1139, 1.0
      %v1269 = vadd.f32 %v1141, 1.0
      %v1270 = vadd.f32 %v1143, 1.0
      %v1271 = vadd.f32 %v1145, 1.0
      %v1272 = vadd.f32 %v1147, 1.0
      %v1273 = vadd.f32 %v1149, 1.0
      %v1274 = vadd.f32 %v1151, 1.0
      %v1275 = vadd.f32 %v1153, 1.0
      %v1276 = vadd.f32 %v1155, 1.0
      %v1277 = vadd.f32 %v1157, 1.0
      %v1278 = vadd.f32 %v1159, 1.0
      %v1279 = vadd.f32 %v1161, 1.0
      %v1280 = vadd.f32 %v1163, 1.0
      %v1281 = vadd.f32 %v1165, 1.0
      %v1282 = vadd.f32 %v1167, 1.0
      %v1283 = vadd.f32 %v1169, 1.0
      %v1284 = vadd.f32 %v1171, 1.0
      %v1285 = vadd.f32 %v1173, 1.0
      %v1286 = vadd.f32 %v1175, 1.0
      %v1287 = vadd.f32 %v1177, 1.0
      %v1288 = vadd.f32 %v1179, 1.0
      %v1289 = vadd.f32 %v1181, 1.0
      %v1290 = vadd.f32 %v1183, 1.0
      %v1291 = vadd.f32 %v1185, 1.0
      %v1292 = vadd.f32 %v1187, 1.0
      %v1293 = vadd.f32 %v1189, 1.0
      %v1294 = vadd.f32 %v1191, 1.0
      %v1295 = vadd.f32 %v1193, 1.0
      %v1296 = vadd.f32 %v1195, 1.0
      %v1297 = vadd.f32 %v1197, 1.0
      %v1298 = vadd.f32 %v1199, 1.0
      %v1299 = vadd.f32 %v1201, 1.0
      %v1300 = vadd.f32 %v1203, 1.0
      %v1301 = vadd.f32 %v1205, 1.0
      %v1302 = vadd.f32 %v1207, 1.0
      %v1303 = vadd.f32 %v1209, 1.0
      %v1304 = vadd.f32 %v1211, 1.0
      %v1305 = vadd.f32 %v1213, 1.0
      %v1306 = vadd.f32 %v1215, 1.0
      %v1307 = vadd.f32 %v1217, 1.0
      %v1308 = vadd.f32 %v1219, 1.0
      %v1309 = vadd.f32 %v1221, 1.0
      %v1310 = vadd.f32 %v1223, 1.0
      %v1311 = vadd.f32 %v1225, 1.0
      %v1312 = vadd.f32 %v1227, 1.0
      %v1313 = vadd.f32 %v1229, 1.0
      %v1314 = vadd.f32 %v1231, 1.0
      %v1315 = vadd.f32 %v1233, 1.0
      %v1316 = vadd.f32 %v1235, 1.0
      %v1317 = vadd.f32 %v1237, 1.0
      %v1318 = vrcp.pop %v1238
      %v1319 = vrcp.pop %v1239
      %v1320 = vrcp.pop %v1240
      %v1321 = vrcp.pop %v1241
      %v1322 = vrcp.pop %v1242
      %v1323 = vrcp.pop %v1243
      %v1324 = vrcp.pop %v1244
      %v1325 = vrcp.pop %v1245
      %v1326 = vrcp.pop %v1246
      %v1327 = vrcp.pop %v1247
      %v1328 = vrcp.pop %v1248
      %v1329 = vrcp.pop %v1249
      %v1330 = vrcp.pop %v1250
      %v1331 = vrcp.pop %v1251
      %v1332 = vrcp.pop %v1252
      %v1333 = vrcp.pop %v1253
      %v1334 = vrcp.pop %v1254
      %v1335 = vrcp.pop %v1255
      %v1336 = vrcp.pop %v1256
      %v1337 = vrcp.pop %v1257
      %v1338 = vrcp.pop %v1258
      %v1339 = vrcp.pop %v1259
      %v1340 = vrcp.pop %v1260
      %v1341 = vrcp.pop %v1261
      %v1342 = vrcp.pop %v1262
      %v1343 = vrcp.pop %v1263
      %v1344 = vrcp.pop %v1264
      %v1345 = vrcp.pop %v1265
      %v1346 = vrcp.pop %v1266
      %v1347 = vrcp.pop %v1267
      %v1348 = vrcp.pop %v1268
      %v1349 = vrcp.pop %v1269
      %v1350 = vrcp.pop %v1270
      %v1351 = vrcp.pop %v1271
      %v1352 = vrcp.pop %v1272
      %v1353 = vrcp.pop %v1273
      %v1354 = vrcp.pop %v1274
      %v1355 = vrcp.pop %v1275
      %v1356 = vrcp.pop %v1276
      %v1357 = vrcp.pop %v1277
      %v1358 = vrcp.pop %v1278
      %v1359 = vrcp.pop %v1279
      %v1360 = vrcp.pop %v1280
      %v1361 = vrcp.pop %v1281
      %v1362 = vrcp.pop %v1282
      %v1363 = vrcp.pop %v1283
      %v1364 = vrcp.pop %v1284
      %v1365 = vrcp.pop %v1285
      %v1366 = vrcp.pop %v1286
      %v1367 = vrcp.pop %v1287
      %v1368 = vrcp.pop %v1288
      %v1369 = vrcp.pop %v1289
      %v1370 = vrcp.pop %v1290
      %v1371 = vrcp.pop %v1291
      %v1372 = vrcp.pop %v1292
      %v1373 = vrcp.pop %v1293
      %v1374 = vrcp.pop %v1294
      %v1375 = vrcp.pop %v1295
      %v1376 = vrcp.pop %v1296
      %v1377 = vrcp.pop %v1297
      %v1378 = vrcp.pop %v1298
      %v1379 = vrcp.pop %v1299
      %v1380 = vrcp.pop %v1300
      %v1381 = vrcp.pop %v1301
      %v1382 = vrcp.pop %v1302
      %v1383 = vrcp.pop %v1303
      %v1384 = vrcp.pop %v1304
      %v1385 = vrcp.pop %v1305
      %v1386 = vrcp.pop %v1306
      %v1387 = vrcp.pop %v1307
      %v1388 = vrcp.pop %v1308
      %v1389 = vrcp.pop %v1309
      %v1390 = vrcp.pop %v1310
      %v1391 = vrcp.pop %v1311
      %v1392 = vrcp.pop %v1312
      %v1393 = vrcp.pop %v1313
      %v1394 = vrcp.pop %v1314
      %v1395 = vrcp.pop %v1315
      %v1396 = vrcp.pop %v1316
      %v1397 = vrcp.pop %v1317
      %v1398 = vmul.f32 %v668, %v1318
      %v1399 = vmul.f32 %v670, %v1319
      %v1400 = vmul.f32 %v741, %v1320
      %v1401 = vmul.f32 %v743, %v1321
      %v1402 = vmul.f32 %v814, %v1322
      %v1403 = vmul.f32 %v816, %v1323
      %v1404 = vmul.f32 %v887, %v1324
      %v1405 = vmul.f32 %v889, %v1325
      %v1406 = vmul.f32 %v960, %v1326
      %v1407 = vmul.f32 %v962, %v1327
      %v1408 = vmul.f32 %v672, %v1328
      %v1409 = vmul.f32 %v674, %v1329
      %v1410 = vmul.f32 %v745, %v1330
      %v1411 = vmul.f32 %v747, %v1331
      %v1412 = vmul.f32 %v818, %v1332
      %v1413 = vmul.f32 %v820, %v1333
      %v1414 = vmul.f32 %v891, %v1334
      %v1415 = vmul.f32 %v893, %v1335
      %v1416 = vmul.f32 %v964, %v1336
      %v1417 = vmul.f32 %v966, %v1337
      %v1418 = vmul.f32 %v678, %v1338
      %v1419 = vmul.f32 %v680, %v1339
      %v1420 = vmul.f32 %v751, %v1340
      %v1421 = vmul.f32 %v753, %v1341
      %v1422 = vmul.f32 %v824, %v1342
      %v1423 = vmul.f32 %v826, %v1343
      %v1424 = vmul.f32 %v897, %v1344
      %v1425 = vmul.f32 %v899, %v1345
      %v1426 = vmul.f32 %v970, %v1346
      %v1427 = vmul.f32 %v972, %v1347
      %v1428 = vmul.f32 %v682, %v1348
      %v1429 = vmul.f32 %v684, %v1349
      %v1430 = vmul.f32 %v755, %v1350
      %v1431 = vmul.f32 %v757, %v1351
      %v1432 = vmul.f32 %v828, %v1352
      %v1433 = vmul.f32 %v830, %v1353
      %v1434 = vmul.f32 %v901, %v1354
      %v1435 = vmul.f32 %v903, %v1355
      %v1436 = vmul.f32 %v974, %v1356
      %v1437 = vmul.f32 %v976, %v1357
      %v1438 = vmul.f32 %v688, %v1358
      %v1439 = vmul.f32 %v690, %v1359
      %v1440 = vmul.f32 %v761, %v1360
      %v1441 = vmul.f32 %v763, %v1361
      %v1442 = vmul.f32 %v834, %v1362
      %v1443 = vmul.f32 %v836, %v1363
      %v1444 = vmul.f32 %v907, %v1364
      %v1445 = vmul.f32 %v909, %v1365
      %v1446 = vmul.f32 %v980, %v1366
      %v1447 = vmul.f32 %v982, %v1367
      %v1448 = vmul.f32 %v692, %v1368
      %v1449 = vmul.f32 %v694, %v1369
      %v1450 = vmul.f32 %v765, %v1370
      %v1451 = vmul.f32 %v767, %v1371
      %v1452 = vmul.f32 %v838, %v1372
      %v1453 = vmul.f32 %v840, %v1373
      %v1454 = vmul.f32 %v911, %v1374
      %v1455 = vmul.f32 %v913, %v1375
      %v1456 = vmul.f32 %v984, %v1376
      %v1457 = vmul.f32 %v986, %v1377
      %v1458 = vmul.f32 %v698, %v1378
      %v1459 = vmul.f32 %v700, %v1379
      %v1460 = vmul.f32 %v771, %v1380
      %v1461 = vmul.f32 %v773, %v1381
      %v1462 = vmul.f32 %v844, %v1382
      %v1463 = vmul.f32 %v846, %v1383
      %v1464 = vmul.f32 %v917, %v1384
      %v1465 = vmul.f32 %v919, %v1385
      %v1466 = vmul.f32 %v990, %v1386
      %v1467 = vmul.f32 %v992, %v1387
      %v1468 = vmul.f32 %v702, %v1388
      %v1469 = vmul.f32 %v704, %v1389
      %v1470 = vmul.f32 %v775, %v1390
      %v1471 = vmul.f32 %v777, %v1391
      %v1472 = vmul.f32 %v848, %v1392
      %v1473 = vmul.f32 %v850, %v1393
      %v1474 = vmul.f32 %v921, %v1394
      %v1475 = vmul.f32 %v923, %v1395
      %v1476 = vmul.f32 %v994, %v1396
      %v1477 = vmul.f32 %v996, %v1397
      %v1478 = vld [vmem:[#allocation2] sm:$0xff]
      %v1479 = vld [vmem:[#allocation2 + $0x8] sm:$0xff]
      %v1480 = vld [vmem:[#allocation2 + $0x10] sm:$0xff]
      %v1481 = vld [vmem:[#allocation2 + $0x18] sm:$0xff]
      %v1482 = vld [vmem:[#allocation2 + $0x20] sm:$0xff]
      %v1483 = vld [vmem:[#allocation2 + $0x28] sm:$0xff]
      %v1484 = vld [vmem:[#allocation2 + $0x30] sm:$0xff]
      %v1485 = vld [vmem:[#allocation2 + $0x38] sm:$0xff]
      %v1486 = vld [vmem:[#allocation2 + $0x40] sm:$0xff]
      %v1487 = vld [vmem:[#allocation2 + $0x48] sm:$0xff]
      %v1488 = vadd.f32 %v1398, %v1408
      %v1489 = vadd.f32 %v1488, %v1418
      %v1490 = vadd.f32 %v1489, %v1428
      %v1491 = vadd.f32 %v1490, %v1438
      %v1492 = vadd.f32 %v1491, %v1448
      %v1493 = vadd.f32 %v1492, %v1458
      %v1494 = vadd.f32 %v1493, %v1468
      %v1495 = vadd.f32 %v1399, %v1409
      %v1496 = vadd.f32 %v1495, %v1419
      %v1497 = vadd.f32 %v1496, %v1429
      %v1498 = vadd.f32 %v1497, %v1439
      %v1499 = vadd.f32 %v1498, %v1449
      %v1500 = vadd.f32 %v1499, %v1459
      %v1501 = vadd.f32 %v1500, %v1469
      %v1502 = vadd.f32 %v1400, %v1410
      %v1503 = vadd.f32 %v1502, %v1420
      %v1504 = vadd.f32 %v1503, %v1430
      %v1505 = vadd.f32 %v1504, %v1440
      %v1506 = vadd.f32 %v1505, %v1450
      %v1507 = vadd.f32 %v1506, %v1460
      %v1508 = vadd.f32 %v1507, %v1470
      %v1509 = vadd.f32 %v1401, %v1411
      %v1510 = vadd.f32 %v1509, %v1421
      %v1511 = vadd.f32 %v1510, %v1431
      %v1512 = vadd.f32 %v1511, %v1441
      %v1513 = vadd.f32 %v1512, %v1451
      %v1514 = vadd.f32 %v1513, %v1461
      %v1515 = vadd.f32 %v1514, %v1471
      %v1516 = vadd.f32 %v1402, %v1412
      %v1517 = vadd.f32 %v1516, %v1422
      %v1518 = vadd.f32 %v1517, %v1432
      %v1519 = vadd.f32 %v1518, %v1442
      %v1520 = vadd.f32 %v1519, %v1452
      %v1521 = vadd.f32 %v1520, %v1462
      %v1522 = vadd.f32 %v1521, %v1472
      %v1523 = vadd.f32 %v1403, %v1413
      %v1524 = vadd.f32 %v1523, %v1423
      %v1525 = vadd.f32 %v1524, %v1433
      %v1526 = vadd.f32 %v1525, %v1443
      %v1527 = vadd.f32 %v1526, %v1453
      %v1528 = vadd.f32 %v1527, %v1463
      %v1529 = vadd.f32 %v1528, %v1473
      %v1530 = vadd.f32 %v1404, %v1414
      %v1531 = vadd.f32 %v1530, %v1424
      %v1532 = vadd.f32 %v1531, %v1434
      %v1533 = vadd.f32 %v1532, %v1444
      %v1534 = vadd.f32 %v1533, %v1454
      %v1535 = vadd.f32 %v1534, %v1464
      %v1536 = vadd.f32 %v1535, %v1474
      %v1537 = vadd.f32 %v1405, %v1415
      %v1538 = vadd.f32 %v1537, %v1425
      %v1539 = vadd.f32 %v1538, %v1435
      %v1540 = vadd.f32 %v1539, %v1445
      %v1541 = vadd.f32 %v1540, %v1455
      %v1542 = vadd.f32 %v1541, %v1465
      %v1543 = vadd.f32 %v1542, %v1475
      %v1544 = vadd.f32 %v1406, %v1416
      %v1545 = vadd.f32 %v1544, %v1426
      %v1546 = vadd.f32 %v1545, %v1436
      %v1547 = vadd.f32 %v1546, %v1446
      %v1548 = vadd.f32 %v1547, %v1456
      %v1549 = vadd.f32 %v1548, %v1466
      %v1550 = vadd.f32 %v1549, %v1476
      %v1551 = vadd.f32 %v1407, %v1417
      %v1552 = vadd.f32 %v1551, %v1427
      %v1553 = vadd.f32 %v1552, %v1437
      %v1554 = vadd.f32 %v1553, %v1447
      %v1555 = vadd.f32 %v1554, %v1457
      %v1556 = vadd.f32 %v1555, %v1467
      %v1557 = vadd.f32 %v1556, %v1477
      %v1558 = vadd.f32 %v1478, %v1494
      %v1559 = vadd.f32 %v1479, %v1501
      %v1560 = vadd.f32 %v1480, %v1508
      %v1561 = vadd.f32 %v1481, %v1515
      %v1562 = vadd.f32 %v1482, %v1522
      %v1563 = vadd.f32 %v1483, %v1529
      %v1564 = vadd.f32 %v1484, %v1536
      %v1565 = vadd.f32 %v1485, %v1543
      %v1566 = vadd.f32 %v1486, %v1550
      %v1567 = vadd.f32 %v1487, %v1557
      %1568 = vst [vmem:[#allocation2] sm:$0xff] %v1558
      %1569 = vst [vmem:[#allocation2 + $0x8] sm:$0xff] %v1559
      %1570 = vst [vmem:[#allocation2 + $0x10] sm:$0xff] %v1560
      %1571 = vst [vmem:[#allocation2 + $0x18] sm:$0xff] %v1561
      %1572 = vst [vmem:[#allocation2 + $0x20] sm:$0xff] %v1562
      %1573 = vst [vmem:[#allocation2 + $0x28] sm:$0xff] %v1563
      %1574 = vst [vmem:[#allocation2 + $0x30] sm:$0xff] %v1564
      %1575 = vst [vmem:[#allocation2 + $0x38] sm:$0xff] %v1565
      %1576 = vst [vmem:[#allocation2 + $0x40] sm:$0xff] %v1566
      %1577 = vst [vmem:[#allocation2 + $0x48] sm:$0xff] %v1567
      // Predicated region
      $region45: #{feature_forward.1} parent=39 // pred_check
        %p1578 = pneg %p252
      $region46: #{feature_forward.1} parent=39 // pred_check_branch
        %1580 = sbr.rel (%p1578) target = $region48
      $region47: #{feature_forward.1} parent=39 // pred_region
        %v1581 = vld [vmem:[#allocation2] sm:$0xff]
        %v1582 = vld [vmem:[#allocation2 + $0x8] sm:$0xff]
        %v1583 = vld [vmem:[#allocation2 + $0x10] sm:$0xff]
        %v1584 = vld [vmem:[#allocation2 + $0x18] sm:$0xff]
        %v1585 = vld [vmem:[#allocation2 + $0x20] sm:$0xff]
        %v1586 = vld [vmem:[#allocation2 + $0x28] sm:$0xff]
        %v1587 = vld [vmem:[#allocation2 + $0x30] sm:$0xff]
        %v1588 = vld [vmem:[#allocation2 + $0x38] sm:$0xff]
        %v1589 = vld [vmem:[#allocation2 + $0x40] sm:$0xff]
        %v1590 = vld [vmem:[#allocation2 + $0x48] sm:$0xff]
        %v1591 = vrot.slane %v1581, 4
        %v1592 = vadd.f32 %v1581, %v1591
        %v1593 = vrot.slane %v1592, 2
        %v1594 = vadd.f32 %v1592, %v1593
        %v1595 = vrot.slane %v1594, 1
        %v1596 = vadd.f32 %v1594, %v1595
        %v1597 = vrot.slane %v1582, 4
        %v1598 = vadd.f32 %v1582, %v1597
        %v1599 = vrot.slane %v1598, 2
        %v1600 = vadd.f32 %v1598, %v1599
        %v1601 = vrot.slane %v1600, 1
        %v1602 = vadd.f32 %v1600, %v1601
        %v1603 = vrot.slane %v1583, 4
        %v1604 = vadd.f32 %v1583, %v1603
        %v1605 = vrot.slane %v1604, 2
        %v1606 = vadd.f32 %v1604, %v1605
        %v1607 = vrot.slane %v1606, 1
        %v1608 = vadd.f32 %v1606, %v1607
        %v1609 = vrot.slane %v1584, 4
        %v1610 = vadd.f32 %v1584, %v1609
        %v1611 = vrot.slane %v1610, 2
        %v1612 = vadd.f32 %v1610, %v1611
        %v1613 = vrot.slane %v1612, 1
        %v1614 = vadd.f32 %v1612, %v1613
        %v1615 = vrot.slane %v1585, 4
        %v1616 = vadd.f32 %v1585, %v1615
        %v1617 = vrot.slane %v1616, 2
        %v1618 = vadd.f32 %v1616, %v1617
        %v1619 = vrot.slane %v1618, 1
        %v1620 = vadd.f32 %v1618, %v1619
        %v1621 = vrot.slane %v1586, 4
        %v1622 = vadd.f32 %v1586, %v1621
        %v1623 = vrot.slane %v1622, 2
        %v1624 = vadd.f32 %v1622, %v1623
        %v1625 = vrot.slane %v1624, 1
        %v1626 = vadd.f32 %v1624, %v1625
        %v1627 = vrot.slane %v1587, 4
        %v1628 = vadd.f32 %v1587, %v1627
        %v1629 = vrot.slane %v1628, 2
        %v1630 = vadd.f32 %v1628, %v1629
        %v1631 = vrot.slane %v1630, 1
        %v1632 = vadd.f32 %v1630, %v1631
        %v1633 = vrot.slane %v1588, 4
        %v1634 = vadd.f32 %v1588, %v1633
        %v1635 = vrot.slane %v1634, 2
        %v1636 = vadd.f32 %v1634, %v1635
        %v1637 = vrot.slane %v1636, 1
        %v1638 = vadd.f32 %v1636, %v1637
        %v1639 = vrot.slane %v1589, 4
        %v1640 = vadd.f32 %v1589, %v1639
        %v1641 = vrot.slane %v1640, 2
        %v1642 = vadd.f32 %v1640, %v1641
        %v1643 = vrot.slane %v1642, 1
        %v1644 = vadd.f32 %v1642, %v1643
        %v1645 = vrot.slane %v1590, 4
        %v1646 = vadd.f32 %v1590, %v1645
        %v1647 = vrot.slane %v1646, 2
        %v1648 = vadd.f32 %v1646, %v1647
        %v1649 = vrot.slane %v1648, 1
        %v1650 = vadd.f32 %v1648, %v1649
        %v1651 = vmul.f32 %v1596, 0.015625
        %v1652 = vmul.f32 %v1602, 0.015625
        %v1653 = vmul.f32 %v1608, 0.015625
        %v1654 = vmul.f32 %v1614, 0.015625
        %v1655 = vmul.f32 %v1620, 0.015625
        %v1656 = vmul.f32 %v1626, 0.015625
        %v1657 = vmul.f32 %v1632, 0.015625
        %v1658 = vmul.f32 %v1638, 0.015625
        %v1659 = vmul.f32 %v1644, 0.015625
        %v1660 = vmul.f32 %v1650, 0.015625
        %v1661 = vadd.f32 %v1651, %v1652
        %v1662 = vadd.f32 %v1661, %v1653
        %v1663 = vadd.f32 %v1662, %v1654
        %v1664 = vadd.f32 %v1663, %v1655
        %v1665 = vadd.f32 %v1664, %v1656
        %v1666 = vadd.f32 %v1665, %v1657
        %v1667 = vadd.f32 %v1666, %v1658
        %v1668 = vadd.f32 %v1667, %v1659
        %v1669 = vadd.f32 %v1668, %v1660
        %1670 = vadd.xlane.f32.xlu0 %v1669
        %v1671 = vpop.xlane.xlu0 %1670
        %v1672 = vrcp.pop 1280.0
        %v1673 = vmul.f32 %v1671, %v1672
        %v1674 = vsub.f32 %v1651, %v1673
        %v1675 = vsub.f32 %v1652, %v1673
        %v1676 = vsub.f32 %v1653, %v1673
        %v1677 = vsub.f32 %v1654, %v1673
        %v1678 = vsub.f32 %v1655, %v1673
        %v1679 = vsub.f32 %v1656, %v1673
        %v1680 = vsub.f32 %v1657, %v1673
        %v1681 = vsub.f32 %v1658, %v1673
        %v1682 = vsub.f32 %v1659, %v1673
        %v1683 = vsub.f32 %v1660, %v1673
        %v1684 = vmul.f32 %v1674, %v1674
        %v1685 = vmul.f32 %v1675, %v1675
        %v1686 = vmul.f32 %v1676, %v1676
        %v1687 = vmul.f32 %v1677, %v1677
        %v1688 = vmul.f32 %v1678, %v1678
        %v1689 = vmul.f32 %v1679, %v1679
        %v1690 = vmul.f32 %v1680, %v1680
        %v1691 = vmul.f32 %v1681, %v1681
        %v1692 = vmul.f32 %v1682, %v1682
        %v1693 = vmul.f32 %v1683, %v1683
        %v1694 = vadd.f32 %v1684, %v1685
        %v1695 = vadd.f32 %v1694, %v1686
        %v1696 = vadd.f32 %v1695, %v1687
        %v1697 = vadd.f32 %v1696, %v1688
        %v1698 = vadd.f32 %v1697, %v1689
        %v1699 = vadd.f32 %v1698, %v1690
        %v1700 = vadd.f32 %v1699, %v1691
        %v1701 = vadd.f32 %v1700, %v1692
        %v1702 = vadd.f32 %v1701, %v1693
        %1703 = vadd.xlane.f32.xlu0 %v1702
        %v1704 = vpop.xlane.xlu0 %1703
        %v1705 = vmul.f32 %v1704, %v1672
        %v1706 = vadd.f32 %v1705, 1e-05
        %v1707 = vrsqrt.pop %v1706
        %v1708 = vmul.f32 %v1674, %v1707
        %v1709 = vmul.f32 %v1675, %v1707
        %v1710 = vmul.f32 %v1676, %v1707
        %v1711 = vmul.f32 %v1677, %v1707
        %v1712 = vmul.f32 %v1678, %v1707
        %v1713 = vmul.f32 %v1679, %v1707
        %v1714 = vmul.f32 %v1680, %v1707
        %v1715 = vmul.f32 %v1681, %v1707
        %v1716 = vmul.f32 %v1682, %v1707
        %v1717 = vmul.f32 %v1683, %v1707
        %v1728 = vcombine.low %v1708, %v1709
        %v1729 = vcombine.low %v1710, %v1711
        %v1730 = vcombine.low %v1712, %v1713
        %v1731 = vcombine.low %v1714, %v1715
        %v1733 = vunpack.c.l.s4 1966171168
        %v1734 = vunpack.c.0.s8 %v1733
        %v1735 = vlaneseq
        %v1736 = vshrl.u32 %v1735, 7
        %v1737 = vsub.s32 %v1734, %v1736
        %v1738 = vrot.slane %v1728, %v1737
        %v1740 = vunpack.c.l.s4 1966171168
        %v1741 = vunpack.c.0.s8 %v1740
        %v1742 = vlaneseq
        %v1743 = vshrl.u32 %v1742, 7
        %v1744 = vsub.s32 %v1741, %v1743
        %v1745 = vrot.slane %v1729, %v1744
        %v1747 = vunpack.c.l.s4 1966171168
        %v1748 = vunpack.c.0.s8 %v1747
        %v1749 = vlaneseq
        %v1750 = vshrl.u32 %v1749, 7
        %v1751 = vsub.s32 %v1748, %v1750
        %v1752 = vrot.slane %v1730, %v1751
        %v1754 = vunpack.c.l.s4 1966171168
        %v1755 = vunpack.c.0.s8 %v1754
        %v1756 = vlaneseq
        %v1757 = vshrl.u32 %v1756, 7
        %v1758 = vsub.s32 %v1755, %v1757
        %v1759 = vrot.slane %v1731, %v1758
        %v1760 = vcombine.low %v1738, %v1745
        %v1761 = vcombine.low %v1752, %v1759
        %v1763 = vunpack.c.l.s4 1966171168
        %v1764 = vunpack.c.0.s8 %v1763
        %v1765 = vlaneseq
        %v1766 = vshrl.u32 %v1765, 7
        %v1767 = vsub.s32 %v1764, %v1766
        %v1768 = vrot.slane %v1760, %v1767
        %v1770 = vunpack.c.l.s4 1966171168
        %v1771 = vunpack.c.0.s8 %v1770
        %v1772 = vlaneseq
        %v1773 = vshrl.u32 %v1772, 7
        %v1774 = vsub.s32 %v1771, %v1773
        %v1775 = vrot.slane %v1761, %v1774
        %v1776 = vcombine.low %v1768, %v1775
        %v1777 = vcombine.low %v1716, %v1717
        %v1779 = vunpack.c.l.s4 1966171168
        %v1780 = vunpack.c.0.s8 %v1779
        %v1781 = vlaneseq
        %v1782 = vshrl.u32 %v1781, 7
        %v1783 = vsub.s32 %v1780, %v1782
        %v1784 = vrot.slane %v1777, %v1783
        %v1786 = vunpack.c.l.s4 1966171168
        %v1787 = vunpack.c.0.s8 %v1786
        %v1788 = vlaneseq
        %v1789 = vshrl.u32 %v1788, 7
        %v1790 = vsub.s32 %v1787, %v1789
        %v1791 = vrot.slane %v1784, %v1790
        %1794 = vst [vmem:[%s250] sm:$0xff] %v1776
        %v1795 = vlaneseq
        %vm1796 = vcmp.ge.s32.totalorder %v1795, 0
        %vm1797 = vcmp.lt.s32.totalorder %v1795, 256
        %vm1798 = vmand %vm1796, %vm1797
        %1799 = vst.msk [vmem:[%s250 + $0x8] sm:$0x3] %vm1798, %v1791
      $region48: #{feature_forward.1} parent=39 // pred_fallthru
        _
      %p1800 = scmp.lt.s32.totalorder %s20, 1
      %s1801 = scalar_select %p1800, %s20, 1
      %s1802 = smul.addr %s1801, 10
      %s1803 = scalar_lea.vmem %s5, %s1802
      // Predicated region
      $region49: #{feature_forward.1} parent=39 // pred_check
        %p1804 = pneg %p158
      $region50: #{feature_forward.1} parent=39 // pred_check_branch
        %1806 = sbr.rel (%p1804) target = $region52
      $region51: #{feature_forward.1} parent=39 // pred_region
        _
      $region52: #{feature_forward.1} parent=39 // pred_fallthru
        _
    $region40: #{feature_forward.1} parent=5 // pred_fallthru
      _
    %p1807 = scmp.le.s32.totalorder 2, %s11
    // Predicated region
    $region53: #{feature_forward.1} parent=5 // pred_check
      %p1808 = pneg %p1807
    $region54: #{feature_forward.1} parent=5 // pred_check_branch
      %1810 = sbr.rel (%p1808) target = $region56
    $region55: #{feature_forward.1} parent=5 // pred_region
      %s1811 = ssub.s32 %s11, 2
      // Predicated region
      $region57: #{feature_forward.1} parent=55 // pred_check
        %p1812 = pneg %p164
      $region58: #{feature_forward.1} parent=55 // pred_check_branch
        %1814 = sbr.rel (%p1812) target = $region60
      $region59: #{feature_forward.1} parent=55 // pred_region
        %p1815 = scmp.lt.s32.totalorder %s22, 1
        %s1816 = scalar_select %p1815, %s22, 1
        %s1817 = smul.addr %s1816, 10
        %s1818 = scalar_lea.vmem %s5, %s1817
      $region60: #{feature_forward.1} parent=55 // pred_fallthru
        _
    $region56: #{feature_forward.1} parent=5 // pred_fallthru
      _
  $region6: #{feature_forward.1} parent=0 // loop_footer
    %s15 = sadd.s32 1, %s11
  $region7: #{feature_forward.1} parent=0 // loop_footer_branch
    %10 = sbr.rel target = $region3
  $region8: #{feature_forward.1} parent=0 // loop_exit
    _

</llo_original>
